<compile_context>
chip_gen: v7x
topology: tpu7x:2x2x1
jax: 0.10.0
libtpu: 0.0.40
codegen_flags: <defaults>
</compile_context>

<pallas_src>
import functools

import numpy as np
import jax
import jax.numpy as jnp
from jax import lax
from jax.experimental import pallas as pl
from jax.experimental.pallas import tpu as pltpu


# ----------------------------------------------------------------------------
# The fused Pallas kernel (one grid step == one image, everything in VMEM)
# ----------------------------------------------------------------------------
def _small_cnn_kernel(*args, stages):
    """Whole SmallCNN forward for one image.

    Activation layout throughout: rows = spatial H, columns = W*C (lane dense).
    `stages` is a static tuple of (H_in, W_in, Cin, Cout, k) per conv layer.
    """
    num_layers = len(stages)
    x_ref = args[0]
    layer_refs = args[1:1 + 4 * num_layers]
    w1_ref, fb1_ref, w2_ref, fb2_ref = args[1 + 4 * num_layers:5 + 4 * num_layers]
    out_ref = args[5 + 4 * num_layers]
    xp_refs = args[6 + 4 * num_layers:6 + 5 * num_layers]

    cur = None  # running activation, shape (H, W*C)
    for li, (H, W, Cin, Cout, k) in enumerate(stages):
        m_ref, cb_ref, er_ref, ec_ref = layer_refs[4 * li:4 * li + 4]
        xp_ref = xp_refs[li]
        pad = k // 2                       # NOTE: matches PyTorch only for odd k
        Wp = W + 2 * pad

        # ---- zero-padded input staging buffer (VMEM scratch) ----------------
        xp_ref[...] = jnp.zeros_like(xp_ref)
        if li == 0:
            # NCHW input block: each channel plane goes into its own
            # channel-blocked column band (column = ci*Wp + q).
            for ci in range(Cin):
                xp_ref[pad:pad + H, ci * Wp + pad:ci * Wp + pad + W] = x_ref[0, ci]
        else:
            # Previous pooled output is already (H, W*Cin), channel-interleaved
            # (column = q*Cin + ci); a single masked store places the interior.
            xp_ref[pad:pad + H, pad * Cin:pad * Cin + W * Cin] = cur

        # ---- conv = k banded matmuls (f32 accumulate) + bias + ReLU ----------
        y = jnp.dot(xp_ref[0:H, :], m_ref[0], preferred_element_type=jnp.float32)
        for dy in range(1, k):
            y = y + jnp.dot(xp_ref[dy:dy + H, :], m_ref[dy],
                            preferred_element_type=jnp.float32)
        y = jnp.maximum(y + cb_ref[...], 0.0)          # bias + ReLU (VPU, f32)

        # ---- MaxPool2d(2,2) fused: 4 shifted static slices + exact 0/1
        #      selection matmuls for the stride-2 decimation -------------------
        z = jnp.maximum(
            jnp.maximum(y[0:H - 1, 0:(W - 1) * Cout], y[0:H - 1, Cout:W * Cout]),
            jnp.maximum(y[1:H, 0:(W - 1) * Cout], y[1:H, Cout:W * Cout]))
        cur = jnp.dot(
            jnp.dot(er_ref[...], z, preferred_element_type=jnp.float32),
            ec_ref[...], preferred_element_type=jnp.float32)  # (H//2, (W//2)*Cout)

    # ---- fc1 + ReLU (NCHW flatten absorbed into permuted weight rows) -------
    Hf = stages[-1][0] // 2
    Wf = stages[-1][1] // 2
    Cf = stages[-1][3]
    feat = Wf * Cf
    h1 = fb1_ref[...]
    for r in range(Hf):
        h1 = h1 + jnp.dot(cur[r:r + 1, :], w1_ref[r * feat:(r + 1) * feat, :],
                          preferred_element_type=jnp.float32)
    h1 = jnp.maximum(h1, 0.0)
    # TODO(synk): nn.Dropout(p=0.3) is identity at inference; not applied here.

    # ---- fc2 -> logits -------------------------------------------------------
    logits = jnp.dot(h1, w2_ref[...], preferred_element_type=jnp.float32) + fb2_ref[...]
    out_ref[0] = logits


def _const_index_map(ndim):
    return lambda b: (0,) * ndim


def small_cnn_forward(packed, x_nchw, *, stages):
    """Fused forward: one pallas_call, gridded over batch (megacore parallel)."""
    B, Cin, H, W = x_nchw.shape
    num_classes = packed["fb2"].shape[1]

    operands = [x_nchw]
    in_specs = [pl.BlockSpec((1, Cin, H, W), lambda b: (b, 0, 0, 0))]
    for li in range(len(stages)):
        for name in ("m", "cb", "er", "ec"):
            a = packed[f"{name}{li}"]
            operands.append(a)
            in_specs.append(pl.BlockSpec(a.shape, _const_index_map(a.ndim)))
    for name in ("w1", "fb1", "w2", "fb2"):
        a = packed[name]
        operands.append(a)
        in_specs.append(pl.BlockSpec(a.shape, _const_index_map(a.ndim)))

    scratch_shapes = []
    for (Hs, Ws, Ci, _Co, k) in stages:
        pad = k // 2
        scratch_shapes.append(
            pltpu.VMEM((Hs + 2 * pad, Ci * (Ws + 2 * pad)), jnp.float32))

    out = pl.pallas_call(
        functools.partial(_small_cnn_kernel, stages=stages),
        out_shape=jax.ShapeDtypeStruct((B, 1, num_classes), jnp.float32),
        grid_spec=pltpu.PrefetchScalarGridSpec(
            num_scalar_prefetch=0,
            grid=(B,),
            in_specs=in_specs,
            out_specs=pl.BlockSpec((1, 1, num_classes), lambda b: (b, 0, 0)),
            scratch_shapes=scratch_shapes),
        compiler_params=pltpu.CompilerParams(
            dimension_semantics=("parallel",)),
    )(*operands)
    return out.reshape(B, num_classes)


# ----------------------------------------------------------------------------
# Parameter init (PyTorch layout: conv OIHW, linear (out, in); xavier_normal)
# ----------------------------------------------------------------------------
def xavier_normal(key, shape, fan_in, fan_out):
    std = (2.0 / (fan_in + fan_out)) ** 0.5
    return std * jax.random.normal(key, shape, dtype=jnp.float32)


def init_params(key, input_channels, num_filters, kernel_size, dense_neurons,
                num_classes, input_size, num_layers):
    params = {"conv": []}
    in_ch = input_channels
    h, w = input_size
    for i in range(num_layers):
        k = kernel_size[i]
        out_ch = num_filters[i]
        key, sub = jax.random.split(key)
        wgt = xavier_normal(sub, (out_ch, in_ch, k, k),
                            fan_in=in_ch * k * k, fan_out=out_ch * k * k)
        params["conv"].append((wgt, jnp.zeros((out_ch,), jnp.float32)))
        in_ch = out_ch
        h, w = h // 2, w // 2          # conv keeps HxW (odd k); pool halves
    conv_out = in_ch * h * w
    key, sub = jax.random.split(key)
    params["fc1"] = (xavier_normal(sub, (dense_neurons, conv_out),
                                   fan_in=conv_out, fan_out=dense_neurons),
                     jnp.zeros((dense_neurons,), jnp.float32))
    key, sub = jax.random.split(key)
    params["fc2"] = (xavier_normal(sub, (num_classes, dense_neurons),
                                   fan_in=dense_neurons, fan_out=num_classes),
                     jnp.zeros((num_classes,), jnp.float32))
    return params


# ----------------------------------------------------------------------------
# One-time packing: banded conv matrices, bias rows, pool selectors, fc perm
# ----------------------------------------------------------------------------
def _band_first_layer(w_oihw, W):
    """Rows indexed by ci*(W+2p)+q  (channel-blocked padded columns)."""
    Cout, Cin, k, _ = w_oihw.shape
    p = k // 2
    Wp = W + 2 * p
    M = np.zeros((k, Cin * Wp, W * Cout), np.float32)
    for dy in range(k):
        for ww in range(W):
            for dx in range(k):
                q = ww + dx
                for ci in range(Cin):
                    M[dy, ci * Wp + q, ww * Cout:(ww + 1) * Cout] = w_oihw[:, ci, dy, dx]
    return M


def _band_inner_layer(w_oihw, W):
    """Rows indexed by q*Cin+ci  (channel-interleaved padded columns)."""
    Cout, Cin, k, _ = w_oihw.shape
    p = k // 2
    Wp = W + 2 * p
    M = np.zeros((k, Wp * Cin, W * Cout), np.float32)
    for dy in range(k):
        for ww in range(W):
            for dx in range(k):
                q = ww + dx
                for ci in range(Cin):
                    M[dy, q * Cin + ci, ww * Cout:(ww + 1) * Cout] = w_oihw[:, ci, dy, dx]
    return M


def _pool_selectors(H, W, C):
    er = np.zeros((H // 2, H - 1), np.float32)
    for i in range(H // 2):
        er[i, 2 * i] = 1.0
    ec = np.zeros(((W - 1) * C, (W // 2) * C), np.float32)
    for j in range(W // 2):
        for c in range(C):
            ec[2 * j * C + c, j * C + c] = 1.0
    return er, ec


def pack_params(params, input_size):
    H, W = input_size
    packed = {}
    stages = []
    for li, (w, b) in enumerate(params["conv"]):
        w_np = np.asarray(w, np.float32)
        b_np = np.asarray(b, np.float32)
        Cout, Cin, k, _ = w_np.shape
        stages.append((H, W, Cin, Cout, k))
        M = _band_first_layer(w_np, W) if li == 0 else _band_inner_layer(w_np, W)
        packed[f"m{li}"] = jnp.asarray(M)
        packed[f"cb{li}"] = jnp.asarray(np.tile(b_np, W)[None, :])
        er, ec = _pool_selectors(H, W, Cout)
        packed[f"er{li}"] = jnp.asarray(er)
        packed[f"ec{li}"] = jnp.asarray(ec)
        H, W = H // 2, W // 2
    Hf, Wf = H, W
    Cf = stages[-1][3]
    # PyTorch flattens NCHW (t = c*Hf*Wf + h*Wf + w); our flatten order is
    # o = h*(Wf*Cf) + w*Cf + c.  Permute fc1 weight rows once at pack time.
    perm = np.array([c * (Hf * Wf) + hh * Wf + ww
                     for hh in range(Hf) for ww in range(Wf) for c in range(Cf)],
                    np.int32)
    w1, b1 = params["fc1"]
    packed["w1"] = jnp.asarray(np.asarray(w1, np.float32).T[perm, :])
    packed["fb1"] = jnp.asarray(np.asarray(b1, np.float32)[None, :])
    w2, b2 = params["fc2"]
    packed["w2"] = jnp.asarray(np.asarray(w2, np.float32).T)
    packed["fb2"] = jnp.asarray(np.asarray(b2, np.float32)[None, :])
    return packed, tuple(stages)


# ----------------------------------------------------------------------------
# Pure-JAX reference (mirrors the PyTorch module exactly) for self-checking
# ----------------------------------------------------------------------------
def reference_forward(params, x_nchw):
    h = x_nchw
    for (w, b) in params["conv"]:
        p = w.shape[-1] // 2
        h = lax.conv_general_dilated(
            h, w, window_strides=(1, 1), padding=[(p, p), (p, p)],
            dimension_numbers=("NCHW", "OIHW", "NCHW"),
            precision=jax.lax.Precision.HIGHEST)
        h = jnp.maximum(h + b[None, :, None, None], 0.0)
        h = lax.reduce_window(h, -jnp.inf, lax.max,
                              (1, 1, 2, 2), (1, 1, 2, 2), "VALID")
    h = h.reshape(h.shape[0], -1)
    w1, b1 = params["fc1"]
    h = jnp.maximum(h @ w1.T + b1, 0.0)
    w2, b2 = params["fc2"]
    return h @ w2.T + b2


# ----------------------------------------------------------------------------
if __name__ == "__main__":
    # Small instantiation of the configurable SmallCNN.
    input_channels = 4
    num_filters = [8, 8]
    kernel_size = [3, 3]
    num_layers = 2
    dense_neurons = 32
    num_classes = 10
    input_size = [16, 16]
    batch = 2

    key = jax.random.PRNGKey(0)
    key, pkey, xkey = jax.random.split(key, 3)
    params = init_params(pkey, input_channels, num_filters, kernel_size,
                         dense_neurons, num_classes, input_size, num_layers)
    x = jax.random.normal(xkey, (batch, input_channels, *input_size),
                          dtype=jnp.float32)          # NCHW like PyTorch

    packed, stages = pack_params(params, input_size)
    fwd = jax.jit(functools.partial(small_cnn_forward, stages=stages))

    logits = jax.block_until_ready(fwd(packed, x))
    assert logits.shape == (batch, num_classes), logits.shape

    # Internal correctness check against a pure-JAX/XLA reference.
    ref = jax.block_until_ready(reference_forward(params, x))
    np.testing.assert_allclose(np.asarray(logits), np.asarray(ref),
                               rtol=2e-2, atol=2e-2)

    print("KERNEL_OK")
</pallas_src>

<mosaic_0001>
module attributes {stable_mosaic.version = 11 : i64} {
  func.func @_small_cnn_kernel(%arg0: i32, %arg1: memref<1x4x16x16xf32, #tpu.memory_space<vmem>>, %arg2: memref<3x72x128xf32, #tpu.memory_space<vmem>>, %arg3: memref<1x128xf32, #tpu.memory_space<vmem>>, %arg4: memref<8x15xf32, #tpu.memory_space<vmem>>, %arg5: memref<120x64xf32, #tpu.memory_space<vmem>>, %arg6: memref<3x80x64xf32, #tpu.memory_space<vmem>>, %arg7: memref<1x64xf32, #tpu.memory_space<vmem>>, %arg8: memref<4x7xf32, #tpu.memory_space<vmem>>, %arg9: memref<56x32xf32, #tpu.memory_space<vmem>>, %arg10: memref<128x32xf32, #tpu.memory_space<vmem>>, %arg11: memref<1x32xf32, #tpu.memory_space<vmem>>, %arg12: memref<32x10xf32, #tpu.memory_space<vmem>>, %arg13: memref<1x10xf32, #tpu.memory_space<vmem>>, %arg14: memref<1x1x10xf32, #tpu.memory_space<vmem>>, %arg15: memref<18x72xf32, #tpu.memory_space<vmem>>, %arg16: memref<10x80xf32, #tpu.memory_space<vmem>>) attributes {dimension_semantics = [#tpu.dimension_semantics<parallel>], iteration_bounds = array<i64: 2>, scalar_prefetch = 0 : i64, scratch_operands = 2 : i64, tpu.core_type = #tpu.core_type<tc>, window_params = [{transform_indices = @transform_0, window_bounds = array<i64: 1, 4, 16, 16>}, {pipeline_mode = #tpu.pipeline_mode<synchronous>, transform_indices = @transform_1, window_bounds = array<i64: 3, 72, 128>}, {pipeline_mode = #tpu.pipeline_mode<synchronous>, transform_indices = @transform_2, window_bounds = array<i64: 1, 128>}, {pipeline_mode = #tpu.pipeline_mode<synchronous>, transform_indices = @transform_3, window_bounds = array<i64: 8, 15>}, {pipeline_mode = #tpu.pipeline_mode<synchronous>, transform_indices = @transform_4, window_bounds = array<i64: 120, 64>}, {pipeline_mode = #tpu.pipeline_mode<synchronous>, transform_indices = @transform_5, window_bounds = array<i64: 3, 80, 64>}, {pipeline_mode = #tpu.pipeline_mode<synchronous>, transform_indices = @transform_6, window_bounds = array<i64: 1, 64>}, {pipeline_mode = #tpu.pipeline_mode<synchronous>, transform_indices = @transform_7, window_bounds = array<i64: 4, 7>}, {pipeline_mode = #tpu.pipeline_mode<synchronous>, transform_indices = @transform_8, window_bounds = array<i64: 56, 32>}, {pipeline_mode = #tpu.pipeline_mode<synchronous>, transform_indices = @transform_9, window_bounds = array<i64: 128, 32>}, {pipeline_mode = #tpu.pipeline_mode<synchronous>, transform_indices = @transform_10, window_bounds = array<i64: 1, 32>}, {pipeline_mode = #tpu.pipeline_mode<synchronous>, transform_indices = @transform_11, window_bounds = array<i64: 32, 10>}, {pipeline_mode = #tpu.pipeline_mode<synchronous>, transform_indices = @transform_12, window_bounds = array<i64: 1, 10>}, {transform_indices = @transform_13, window_bounds = array<i64: 1, 1, 10>}]} {
    %cst = arith.constant 0.000000e+00 : f32
    %0 = vector.broadcast %cst : f32 to vector<18x72xf32>
    %c0 = arith.constant 0 : index
    %c0_0 = arith.constant 0 : index
    %1 = vector.load %arg15[%c0, %c0_0] : memref<18x72xf32, #tpu.memory_space<vmem>>, vector<18x72xf32>
    tpu.vector_store %arg15[%c0, %c0_0], %0 {strides = array<i32>} : memref<18x72xf32, #tpu.memory_space<vmem>>, vector<18x72xf32>,
    %c0_1 = arith.constant 0 : index
    %c0_2 = arith.constant 0 : index
    %c0_3 = arith.constant 0 : index
    %c0_4 = arith.constant 0 : index
    %2 = vector.load %arg1[%c0_1, %c0_2, %c0_3, %c0_4] : memref<1x4x16x16xf32, #tpu.memory_space<vmem>>, vector<1x1x16x16xf32>
    %3 = vector.shape_cast %2 : vector<1x1x16x16xf32> to vector<16x16xf32>
    %c1 = arith.constant 1 : index
    %c1_5 = arith.constant 1 : index
    %4 = vector.load %arg15[%c1, %c1_5] : memref<18x72xf32, #tpu.memory_space<vmem>>, vector<16x16xf32>
    tpu.vector_store %arg15[%c1, %c1_5], %3 {strides = array<i32>} : memref<18x72xf32, #tpu.memory_space<vmem>>, vector<16x16xf32>,
    %c0_6 = arith.constant 0 : index
    %c1_7 = arith.constant 1 : index
    %c0_8 = arith.constant 0 : index
    %c0_9 = arith.constant 0 : index
    %5 = vector.load %arg1[%c0_6, %c1_7, %c0_8, %c0_9] : memref<1x4x16x16xf32, #tpu.memory_space<vmem>>, vector<1x1x16x16xf32>
    %6 = vector.shape_cast %5 : vector<1x1x16x16xf32> to vector<16x16xf32>
    %c1_10 = arith.constant 1 : index
    %c19 = arith.constant 19 : index
    %7 = vector.load %arg15[%c1_10, %c19] : memref<18x72xf32, #tpu.memory_space<vmem>>, vector<16x16xf32>
    tpu.vector_store %arg15[%c1_10, %c19], %6 {strides = array<i32>} : memref<18x72xf32, #tpu.memory_space<vmem>>, vector<16x16xf32>,
    %c0_11 = arith.constant 0 : index
    %c2 = arith.constant 2 : index
    %c0_12 = arith.constant 0 : index
    %c0_13 = arith.constant 0 : index
    %8 = vector.load %arg1[%c0_11, %c2, %c0_12, %c0_13] : memref<1x4x16x16xf32, #tpu.memory_space<vmem>>, vector<1x1x16x16xf32>
    %9 = vector.shape_cast %8 : vector<1x1x16x16xf32> to vector<16x16xf32>
    %c1_14 = arith.constant 1 : index
    %c37 = arith.constant 37 : index
    %10 = vector.load %arg15[%c1_14, %c37] : memref<18x72xf32, #tpu.memory_space<vmem>>, vector<16x16xf32>
    tpu.vector_store %arg15[%c1_14, %c37], %9 {strides = array<i32>} : memref<18x72xf32, #tpu.memory_space<vmem>>, vector<16x16xf32>,
    %c0_15 = arith.constant 0 : index
    %c3 = arith.constant 3 : index
    %c0_16 = arith.constant 0 : index
    %c0_17 = arith.constant 0 : index
    %11 = vector.load %arg1[%c0_15, %c3, %c0_16, %c0_17] : memref<1x4x16x16xf32, #tpu.memory_space<vmem>>, vector<1x1x16x16xf32>
    %12 = vector.shape_cast %11 : vector<1x1x16x16xf32> to vector<16x16xf32>
    %c1_18 = arith.constant 1 : index
    %c55 = arith.constant 55 : index
    %13 = vector.load %arg15[%c1_18, %c55] : memref<18x72xf32, #tpu.memory_space<vmem>>, vector<16x16xf32>
    tpu.vector_store %arg15[%c1_18, %c55], %12 {strides = array<i32>} : memref<18x72xf32, #tpu.memory_space<vmem>>, vector<16x16xf32>,
    %c0_19 = arith.constant 0 : index
    %c0_20 = arith.constant 0 : index
    %14 = vector.load %arg15[%c0_19, %c0_20] : memref<18x72xf32, #tpu.memory_space<vmem>>, vector<16x72xf32>
    %c0_21 = arith.constant 0 : index
    %c0_22 = arith.constant 0 : index
    %c0_23 = arith.constant 0 : index
    %15 = vector.load %arg2[%c0_21, %c0_22, %c0_23] : memref<3x72x128xf32, #tpu.memory_space<vmem>>, vector<1x72x128xf32>
    %16 = vector.shape_cast %15 : vector<1x72x128xf32> to vector<72x128xf32>
    %cst_24 = arith.constant dense<0.000000e+00> : vector<16x128xf32>
    %17 = tpu.matmul %14, %16, %cst_24 {dimension_numbers = #tpu.dot_dimension_numbers<[1], [0], [0], [1], [0, 0, 1, 1], [], []>} : vector<16x72xf32>, vector<72x128xf32>, vector<16x128xf32> -> vector<16x128xf32>
    %c1_25 = arith.constant 1 : index
    %c0_26 = arith.constant 0 : index
    %18 = vector.load %arg15[%c1_25, %c0_26] : memref<18x72xf32, #tpu.memory_space<vmem>>, vector<16x72xf32>
    %c1_27 = arith.constant 1 : index
    %c0_28 = arith.constant 0 : index
    %c0_29 = arith.constant 0 : index
    %19 = vector.load %arg2[%c1_27, %c0_28, %c0_29] : memref<3x72x128xf32, #tpu.memory_space<vmem>>, vector<1x72x128xf32>
    %20 = vector.shape_cast %19 : vector<1x72x128xf32> to vector<72x128xf32>
    %cst_30 = arith.constant dense<0.000000e+00> : vector<16x128xf32>
    %21 = tpu.matmul %18, %20, %cst_30 {dimension_numbers = #tpu.dot_dimension_numbers<[1], [0], [0], [1], [0, 0, 1, 1], [], []>} : vector<16x72xf32>, vector<72x128xf32>, vector<16x128xf32> -> vector<16x128xf32>
    %22 = arith.addf %17, %21 : vector<16x128xf32>
    %c2_31 = arith.constant 2 : index
    %c0_32 = arith.constant 0 : index
    %23 = vector.load %arg15[%c2_31, %c0_32] : memref<18x72xf32, #tpu.memory_space<vmem>>, vector<16x72xf32>
    %c2_33 = arith.constant 2 : index
    %c0_34 = arith.constant 0 : index
    %c0_35 = arith.constant 0 : index
    %24 = vector.load %arg2[%c2_33, %c0_34, %c0_35] : memref<3x72x128xf32, #tpu.memory_space<vmem>>, vector<1x72x128xf32>
    %25 = vector.shape_cast %24 : vector<1x72x128xf32> to vector<72x128xf32>
    %cst_36 = arith.constant dense<0.000000e+00> : vector<16x128xf32>
    %26 = tpu.matmul %23, %25, %cst_36 {dimension_numbers = #tpu.dot_dimension_numbers<[1], [0], [0], [1], [0, 0, 1, 1], [], []>} : vector<16x72xf32>, vector<72x128xf32>, vector<16x128xf32> -> vector<16x128xf32>
    %27 = arith.addf %22, %26 : vector<16x128xf32>
    %c0_37 = arith.constant 0 : index
    %c0_38 = arith.constant 0 : index
    %28 = vector.load %arg3[%c0_37, %c0_38] : memref<1x128xf32, #tpu.memory_space<vmem>>, vector<1x128xf32>
    %29 = vector.broadcast %28 : vector<1x128xf32> to vector<16x128xf32>
    %30 = arith.addf %27, %29 : vector<16x128xf32>
    %cst_39 = arith.constant 0.000000e+00 : f32
    %31 = vector.broadcast %cst_39 : f32 to vector<16x128xf32>
    %32 = arith.maximumf %30, %31 : vector<16x128xf32>
    %33 = vector.extract_strided_slice %32 {offsets = [0, 0], sizes = [15, 120], strides = [1, 1]} : vector<16x128xf32> to vector<15x120xf32>
    %34 = vector.extract_strided_slice %32 {offsets = [0, 8], sizes = [15, 120], strides = [1, 1]} : vector<16x128xf32> to vector<15x120xf32>
    %35 = arith.maximumf %33, %34 : vector<15x120xf32>
    %36 = vector.extract_strided_slice %32 {offsets = [1, 0], sizes = [15, 120], strides = [1, 1]} : vector<16x128xf32> to vector<15x120xf32>
    %37 = vector.extract_strided_slice %32 {offsets = [1, 8], sizes = [15, 120], strides = [1, 1]} : vector<16x128xf32> to vector<15x120xf32>
    %38 = arith.maximumf %36, %37 : vector<15x120xf32>
    %39 = arith.maximumf %35, %38 : vector<15x120xf32>
    %c0_40 = arith.constant 0 : index
    %c0_41 = arith.constant 0 : index
    %40 = vector.load %arg4[%c0_40, %c0_41] : memref<8x15xf32, #tpu.memory_space<vmem>>, vector<8x15xf32>
    %cst_42 = arith.constant dense<0.000000e+00> : vector<8x120xf32>
    %41 = tpu.matmul %40, %39, %cst_42 {dimension_numbers = #tpu.dot_dimension_numbers<[1], [0], [0], [1], [0, 0, 1, 1], [], []>} : vector<8x15xf32>, vector<15x120xf32>, vector<8x120xf32> -> vector<8x120xf32>
    %c0_43 = arith.constant 0 : index
    %c0_44 = arith.constant 0 : index
    %42 = vector.load %arg5[%c0_43, %c0_44] : memref<120x64xf32, #tpu.memory_space<vmem>>, vector<120x64xf32>
    %cst_45 = arith.constant dense<0.000000e+00> : vector<8x64xf32>
    %43 = tpu.matmul %41, %42, %cst_45 {dimension_numbers = #tpu.dot_dimension_numbers<[1], [0], [0], [1], [0, 0, 1, 1], [], []>} : vector<8x120xf32>, vector<120x64xf32>, vector<8x64xf32> -> vector<8x64xf32>
    %cst_46 = arith.constant 0.000000e+00 : f32
    %44 = vector.broadcast %cst_46 : f32 to vector<10x80xf32>
    %c0_47 = arith.constant 0 : index
    %c0_48 = arith.constant 0 : index
    %45 = vector.load %arg16[%c0_47, %c0_48] : memref<10x80xf32, #tpu.memory_space<vmem>>, vector<10x80xf32>
    tpu.vector_store %arg16[%c0_47, %c0_48], %44 {strides = array<i32>} : memref<10x80xf32, #tpu.memory_space<vmem>>, vector<10x80xf32>,
    %c1_49 = arith.constant 1 : index
    %c8 = arith.constant 8 : index
    %46 = vector.load %arg16[%c1_49, %c8] : memref<10x80xf32, #tpu.memory_space<vmem>>, vector<8x64xf32>
    tpu.vector_store %arg16[%c1_49, %c8], %43 {strides = array<i32>} : memref<10x80xf32, #tpu.memory_space<vmem>>, vector<8x64xf32>,
    %c0_50 = arith.constant 0 : index
    %c0_51 = arith.constant 0 : index
    %47 = vector.load %arg16[%c0_50, %c0_51] : memref<10x80xf32, #tpu.memory_space<vmem>>, vector<8x80xf32>
    %c0_52 = arith.constant 0 : index
    %c0_53 = arith.constant 0 : index
    %c0_54 = arith.constant 0 : index
    %48 = vector.load %arg6[%c0_52, %c0_53, %c0_54] : memref<3x80x64xf32, #tpu.memory_space<vmem>>, vector<1x80x64xf32>
    %49 = vector.shape_cast %48 : vector<1x80x64xf32> to vector<80x64xf32>
    %cst_55 = arith.constant dense<0.000000e+00> : vector<8x64xf32>
    %50 = tpu.matmul %47, %49, %cst_55 {dimension_numbers = #tpu.dot_dimension_numbers<[1], [0], [0], [1], [0, 0, 1, 1], [], []>} : vector<8x80xf32>, vector<80x64xf32>, vector<8x64xf32> -> vector<8x64xf32>
    %c1_56 = arith.constant 1 : index
    %c0_57 = arith.constant 0 : index
    %51 = vector.load %arg16[%c1_56, %c0_57] : memref<10x80xf32, #tpu.memory_space<vmem>>, vector<8x80xf32>
    %c1_58 = arith.constant 1 : index
    %c0_59 = arith.constant 0 : index
    %c0_60 = arith.constant 0 : index
    %52 = vector.load %arg6[%c1_58, %c0_59, %c0_60] : memref<3x80x64xf32, #tpu.memory_space<vmem>>, vector<1x80x64xf32>
    %53 = vector.shape_cast %52 : vector<1x80x64xf32> to vector<80x64xf32>
    %cst_61 = arith.constant dense<0.000000e+00> : vector<8x64xf32>
    %54 = tpu.matmul %51, %53, %cst_61 {dimension_numbers = #tpu.dot_dimension_numbers<[1], [0], [0], [1], [0, 0, 1, 1], [], []>} : vector<8x80xf32>, vector<80x64xf32>, vector<8x64xf32> -> vector<8x64xf32>
    %55 = arith.addf %50, %54 : vector<8x64xf32>
    %c2_62 = arith.constant 2 : index
    %c0_63 = arith.constant 0 : index
    %56 = vector.load %arg16[%c2_62, %c0_63] : memref<10x80xf32, #tpu.memory_space<vmem>>, vector<8x80xf32>
    %c2_64 = arith.constant 2 : index
    %c0_65 = arith.constant 0 : index
    %c0_66 = arith.constant 0 : index
    %57 = vector.load %arg6[%c2_64, %c0_65, %c0_66] : memref<3x80x64xf32, #tpu.memory_space<vmem>>, vector<1x80x64xf32>
    %58 = vector.shape_cast %57 : vector<1x80x64xf32> to vector<80x64xf32>
    %cst_67 = arith.constant dense<0.000000e+00> : vector<8x64xf32>
    %59 = tpu.matmul %56, %58, %cst_67 {dimension_numbers = #tpu.dot_dimension_numbers<[1], [0], [0], [1], [0, 0, 1, 1], [], []>} : vector<8x80xf32>, vector<80x64xf32>, vector<8x64xf32> -> vector<8x64xf32>
    %60 = arith.addf %55, %59 : vector<8x64xf32>
    %c0_68 = arith.constant 0 : index
    %c0_69 = arith.constant 0 : index
    %61 = vector.load %arg7[%c0_68, %c0_69] : memref<1x64xf32, #tpu.memory_space<vmem>>, vector<1x64xf32>
    %62 = vector.broadcast %61 : vector<1x64xf32> to vector<8x64xf32>
    %63 = arith.addf %60, %62 : vector<8x64xf32>
    %cst_70 = arith.constant 0.000000e+00 : f32
    %64 = vector.broadcast %cst_70 : f32 to vector<8x64xf32>
    %65 = arith.maximumf %63, %64 : vector<8x64xf32>
    %66 = vector.extract_strided_slice %65 {offsets = [0, 0], sizes = [7, 56], strides = [1, 1]} : vector<8x64xf32> to vector<7x56xf32>
    %67 = vector.extract_strided_slice %65 {offsets = [0, 8], sizes = [7, 56], strides = [1, 1]} : vector<8x64xf32> to vector<7x56xf32>
    %68 = arith.maximumf %66, %67 : vector<7x56xf32>
    %69 = vector.extract_strided_slice %65 {offsets = [1, 0], sizes = [7, 56], strides = [1, 1]} : vector<8x64xf32> to vector<7x56xf32>
    %70 = vector.extract_strided_slice %65 {offsets = [1, 8], sizes = [7, 56], strides = [1, 1]} : vector<8x64xf32> to vector<7x56xf32>
    %71 = arith.maximumf %69, %70 : vector<7x56xf32>
    %72 = arith.maximumf %68, %71 : vector<7x56xf32>
    %c0_71 = arith.constant 0 : index
    %c0_72 = arith.constant 0 : index
    %73 = vector.load %arg8[%c0_71, %c0_72] : memref<4x7xf32, #tpu.memory_space<vmem>>, vector<4x7xf32>
    %cst_73 = arith.constant dense<0.000000e+00> : vector<4x56xf32>
    %74 = tpu.matmul %73, %72, %cst_73 {dimension_numbers = #tpu.dot_dimension_numbers<[1], [0], [0], [1], [0, 0, 1, 1], [], []>} : vector<4x7xf32>, vector<7x56xf32>, vector<4x56xf32> -> vector<4x56xf32>
    %c0_74 = arith.constant 0 : index
    %c0_75 = arith.constant 0 : index
    %75 = vector.load %arg9[%c0_74, %c0_75] : memref<56x32xf32, #tpu.memory_space<vmem>>, vector<56x32xf32>
    %cst_76 = arith.constant dense<0.000000e+00> : vector<4x32xf32>
    %76 = tpu.matmul %74, %75, %cst_76 {dimension_numbers = #tpu.dot_dimension_numbers<[1], [0], [0], [1], [0, 0, 1, 1], [], []>} : vector<4x56xf32>, vector<56x32xf32>, vector<4x32xf32> -> vector<4x32xf32>
    %c0_77 = arith.constant 0 : index
    %c0_78 = arith.constant 0 : index
    %77 = vector.load %arg11[%c0_77, %c0_78] : memref<1x32xf32, #tpu.memory_space<vmem>>, vector<1x32xf32>
    %78 = vector.extract_strided_slice %76 {offsets = [0, 0], sizes = [1, 32], strides = [1, 1]} : vector<4x32xf32> to vector<1x32xf32>
    %c0_79 = arith.constant 0 : index
    %c0_80 = arith.constant 0 : index
    %79 = vector.load %arg10[%c0_79, %c0_80] : memref<128x32xf32, #tpu.memory_space<vmem>>, vector<32x32xf32>
    %cst_81 = arith.constant dense<0.000000e+00> : vector<1x32xf32>
    %80 = tpu.matmul %78, %79, %cst_81 {dimension_numbers = #tpu.dot_dimension_numbers<[1], [0], [0], [1], [0, 0, 1, 1], [], []>} : vector<1x32xf32>, vector<32x32xf32>, vector<1x32xf32> -> vector<1x32xf32>
    %81 = arith.addf %77, %80 : vector<1x32xf32>
    %82 = vector.extract_strided_slice %76 {offsets = [1, 0], sizes = [1, 32], strides = [1, 1]} : vector<4x32xf32> to vector<1x32xf32>
    %c32 = arith.constant 32 : index
    %c0_82 = arith.constant 0 : index
    %83 = vector.load %arg10[%c32, %c0_82] : memref<128x32xf32, #tpu.memory_space<vmem>>, vector<32x32xf32>
    %cst_83 = arith.constant dense<0.000000e+00> : vector<1x32xf32>
    %84 = tpu.matmul %82, %83, %cst_83 {dimension_numbers = #tpu.dot_dimension_numbers<[1], [0], [0], [1], [0, 0, 1, 1], [], []>} : vector<1x32xf32>, vector<32x32xf32>, vector<1x32xf32> -> vector<1x32xf32>
    %85 = arith.addf %81, %84 : vector<1x32xf32>
    %86 = vector.extract_strided_slice %76 {offsets = [2, 0], sizes = [1, 32], strides = [1, 1]} : vector<4x32xf32> to vector<1x32xf32>
    %c64 = arith.constant 64 : index
    %c0_84 = arith.constant 0 : index
    %87 = vector.load %arg10[%c64, %c0_84] : memref<128x32xf32, #tpu.memory_space<vmem>>, vector<32x32xf32>
    %cst_85 = arith.constant dense<0.000000e+00> : vector<1x32xf32>
    %88 = tpu.matmul %86, %87, %cst_85 {dimension_numbers = #tpu.dot_dimension_numbers<[1], [0], [0], [1], [0, 0, 1, 1], [], []>} : vector<1x32xf32>, vector<32x32xf32>, vector<1x32xf32> -> vector<1x32xf32>
    %89 = arith.addf %85, %88 : vector<1x32xf32>
    %90 = vector.extract_strided_slice %76 {offsets = [3, 0], sizes = [1, 32], strides = [1, 1]} : vector<4x32xf32> to vector<1x32xf32>
    %c96 = arith.constant 96 : index
    %c0_86 = arith.constant 0 : index
    %91 = vector.load %arg10[%c96, %c0_86] : memref<128x32xf32, #tpu.memory_space<vmem>>, vector<32x32xf32>
    %cst_87 = arith.constant dense<0.000000e+00> : vector<1x32xf32>
    %92 = tpu.matmul %90, %91, %cst_87 {dimension_numbers = #tpu.dot_dimension_numbers<[1], [0], [0], [1], [0, 0, 1, 1], [], []>} : vector<1x32xf32>, vector<32x32xf32>, vector<1x32xf32> -> vector<1x32xf32>
    %93 = arith.addf %89, %92 : vector<1x32xf32>
    %cst_88 = arith.constant 0.000000e+00 : f32
    %94 = vector.broadcast %cst_88 : f32 to vector<1x32xf32>
    %95 = arith.maximumf %93, %94 : vector<1x32xf32>
    %c0_89 = arith.constant 0 : index
    %c0_90 = arith.constant 0 : index
    %96 = vector.load %arg12[%c0_89, %c0_90] : memref<32x10xf32, #tpu.memory_space<vmem>>, vector<32x10xf32>
    %cst_91 = arith.constant dense<0.000000e+00> : vector<1x10xf32>
    %97 = tpu.matmul %95, %96, %cst_91 {dimension_numbers = #tpu.dot_dimension_numbers<[1], [0], [0], [1], [0, 0, 1, 1], [], []>} : vector<1x32xf32>, vector<32x10xf32>, vector<1x10xf32> -> vector<1x10xf32>
    %c0_92 = arith.constant 0 : index
    %c0_93 = arith.constant 0 : index
    %98 = vector.load %arg13[%c0_92, %c0_93] : memref<1x10xf32, #tpu.memory_space<vmem>>, vector<1x10xf32>
    %99 = arith.addf %97, %98 : vector<1x10xf32>
    %c0_94 = arith.constant 0 : index
    %c0_95 = arith.constant 0 : index
    %c0_96 = arith.constant 0 : index
    %100 = vector.load %arg14[%c0_94, %c0_95, %c0_96] : memref<1x1x10xf32, #tpu.memory_space<vmem>>, vector<1x1x10xf32>
    %101 = vector.shape_cast %100 : vector<1x1x10xf32> to vector<1x10xf32>
    %102 = vector.shape_cast %99 : vector<1x10xf32> to vector<1x1x10xf32>
    tpu.vector_store %arg14[%c0_94, %c0_95, %c0_96], %102 {strides = array<i32>} : memref<1x1x10xf32, #tpu.memory_space<vmem>>, vector<1x1x10xf32>,
    return
  }
  func.func @transform_0(%arg0: i32) -> (i32, i32, i32, i32) {
    %c0_i32 = arith.constant 0 : i32
    %c0_i32_0 = arith.constant 0 : i32
    %c0_i32_1 = arith.constant 0 : i32
    %c0_i32_2 = arith.constant 0 : i32
    return %arg0, %c0_i32, %c0_i32_0, %c0_i32_1 : i32, i32, i32, i32
  }
  func.func @transform_1(%arg0: i32) -> (i32, i32, i32) {
    %c0_i32 = arith.constant 0 : i32
    %c0_i32_0 = arith.constant 0 : i32
    %c0_i32_1 = arith.constant 0 : i32
    %c0_i32_2 = arith.constant 0 : i32
    return %c0_i32, %c0_i32_0, %c0_i32_1 : i32, i32, i32
  }
  func.func @transform_2(%arg0: i32) -> (i32, i32) {
    %c0_i32 = arith.constant 0 : i32
    %c0_i32_0 = arith.constant 0 : i32
    %c0_i32_1 = arith.constant 0 : i32
    return %c0_i32, %c0_i32_0 : i32, i32
  }
  func.func @transform_3(%arg0: i32) -> (i32, i32) {
    %c0_i32 = arith.constant 0 : i32
    %c0_i32_0 = arith.constant 0 : i32
    %c0_i32_1 = arith.constant 0 : i32
    return %c0_i32, %c0_i32_0 : i32, i32
  }
  func.func @transform_4(%arg0: i32) -> (i32, i32) {
    %c0_i32 = arith.constant 0 : i32
    %c0_i32_0 = arith.constant 0 : i32
    %c0_i32_1 = arith.constant 0 : i32
    return %c0_i32, %c0_i32_0 : i32, i32
  }
  func.func @transform_5(%arg0: i32) -> (i32, i32, i32) {
    %c0_i32 = arith.constant 0 : i32
    %c0_i32_0 = arith.constant 0 : i32
    %c0_i32_1 = arith.constant 0 : i32
    %c0_i32_2 = arith.constant 0 : i32
    return %c0_i32, %c0_i32_0, %c0_i32_1 : i32, i32, i32
  }
  func.func @transform_6(%arg0: i32) -> (i32, i32) {
    %c0_i32 = arith.constant 0 : i32
    %c0_i32_0 = arith.constant 0 : i32
    %c0_i32_1 = arith.constant 0 : i32
    return %c0_i32, %c0_i32_0 : i32, i32
  }
  func.func @transform_7(%arg0: i32) -> (i32, i32) {
    %c0_i32 = arith.constant 0 : i32
    %c0_i32_0 = arith.constant 0 : i32
    %c0_i32_1 = arith.constant 0 : i32
    return %c0_i32, %c0_i32_0 : i32, i32
  }
  func.func @transform_8(%arg0: i32) -> (i32, i32) {
    %c0_i32 = arith.constant 0 : i32
    %c0_i32_0 = arith.constant 0 : i32
    %c0_i32_1 = arith.constant 0 : i32
    return %c0_i32, %c0_i32_0 : i32, i32
  }
  func.func @transform_9(%arg0: i32) -> (i32, i32) {
    %c0_i32 = arith.constant 0 : i32
    %c0_i32_0 = arith.constant 0 : i32
    %c0_i32_1 = arith.constant 0 : i32
    return %c0_i32, %c0_i32_0 : i32, i32
  }
  func.func @transform_10(%arg0: i32) -> (i32, i32) {
    %c0_i32 = arith.constant 0 : i32
    %c0_i32_0 = arith.constant 0 : i32
    %c0_i32_1 = arith.constant 0 : i32
    return %c0_i32, %c0_i32_0 : i32, i32
  }
  func.func @transform_11(%arg0: i32) -> (i32, i32) {
    %c0_i32 = arith.constant 0 : i32
    %c0_i32_0 = arith.constant 0 : i32
    %c0_i32_1 = arith.constant 0 : i32
    return %c0_i32, %c0_i32_0 : i32, i32
  }
  func.func @transform_12(%arg0: i32) -> (i32, i32) {
    %c0_i32 = arith.constant 0 : i32
    %c0_i32_0 = arith.constant 0 : i32
    %c0_i32_1 = arith.constant 0 : i32
    return %c0_i32, %c0_i32_0 : i32, i32
  }
  func.func @transform_13(%arg0: i32) -> (i32, i32, i32) {
    %c0_i32 = arith.constant 0 : i32
    %c0_i32_0 = arith.constant 0 : i32
    %c0_i32_1 = arith.constant 0 : i32
    return %arg0, %c0_i32, %c0_i32_0 : i32, i32, i32
  }
}

</mosaic_0001>

<llo_original>
// kernel: small_cnn_forward.1
$region0: #{small_cnn_forward.1}
  #allocation0 [shape = 'u32[]', space=smem, size = 0x4, offset = 0x4, fixed_abs, tag = 'smem constant byte address 0x4 - core index']
  #allocation1 [shape = 'u32[144,128]{1,0:T(1,128)}', space=vmem, size = 0x12000, scoped, tag = 'internal scratch']
  #allocation2 [shape = 'f32[18,72]{1,0:T(8,128)}', space=vmem, size = 0x3000, scoped, tag = 'scratch operand']
  #allocation3 [shape = 'f32[10,80]{1,0:T(8,128)}', space=vmem, size = 0x2000, scoped, tag = 'scratch operand']
  %s0 = inlined_call_operand.vmem [shape: f32[2,4,16,16], index: 0, kind: input, shape index: {}]
  %s1 = inlined_call_operand.vmem [shape: f32[3,72,128], index: 1, kind: input, shape index: {}]
  %s2 = inlined_call_operand.vmem [shape: f32[1,128], index: 2, kind: input, shape index: {}]
  %s3 = inlined_call_operand.vmem [shape: f32[8,15], index: 3, kind: input, shape index: {}]
  %s4 = inlined_call_operand.vmem [shape: f32[120,64], index: 4, kind: input, shape index: {}]
  %s5 = inlined_call_operand.vmem [shape: f32[3,80,64], index: 5, kind: input, shape index: {}]
  %s6 = inlined_call_operand.vmem [shape: f32[1,64], index: 6, kind: input, shape index: {}]
  %s7 = inlined_call_operand.vmem [shape: f32[4,7], index: 7, kind: input, shape index: {}]
  %s8 = inlined_call_operand.vmem [shape: f32[56,32], index: 8, kind: input, shape index: {}]
  %s9 = inlined_call_operand.vmem [shape: f32[128,32], index: 9, kind: input, shape index: {}]
  %s10 = inlined_call_operand.vmem [shape: f32[1,32], index: 10, kind: input, shape index: {}]
  %s11 = inlined_call_operand.vmem [shape: f32[32,10], index: 11, kind: input, shape index: {}]
  %s12 = inlined_call_operand.vmem [shape: f32[1,10], index: 12, kind: input, shape index: {}]
  %s13 = inlined_call_operand.hbm [shape: f32[2,1,10], index: 13, kind: output, shape index: {}]
  %s14 = sld [smem:[#allocation0]]
  $region85: #{small_cnn_forward.1} parent=0
    _
  %s16 = ssub.s32 1, %s14
  %s17 = scalar_select 0, %s16, %s14
  $region1: #{small_cnn_forward.1} parent=0
    #allocation4 [shape = 'u8[1024]{0}', space=vmem, size = 0x400, scoped, tag = 'output window, operand 0']
    #allocation5 [shape = 's32[2]{0}', space=sflag, size = 0x8, scoped, tag = 'scoped memory for small_cnn_forward.1']
    %18 = vsyncpa [#allocation5], 0
    %s19 = scalar_lea.sflag [#allocation5], 1
    %20 = vsyncpa %s19, 0
    loop: start=0, step=1, limit=4
    $region2: #{small_cnn_forward.1} parent=1 // loop_pre_header
      _
    $region3: #{small_cnn_forward.1} parent=1 // loop_header
      %s22 = sphi 0, %s26
      %p23 = scmp.ge.s32.totalorder %s22, 4
      %s32 = sphi 0, %s34
      %s35 = sphi 0, %s32
      %s36 = sphi 0, %s35
      %s52 = sphi 0, %s36
      %s56 = sphi 0, %s56
      %s58 = sphi 0, %s56
      %s59 = sphi 0, %s58
      %s73 = sphi 0, %s59
      %s77 = sphi 0, %s77
      %s79 = sphi 0, %s77
      %s80 = sphi 0, %s79
      %s94 = sphi 0, %s80
      %s98 = sphi 0, %s98
      %s100 = sphi 0, %s98
      %s101 = sphi 0, %s100
      %s115 = sphi 0, %s101
      %s119 = sphi 0, %s119
      %s121 = sphi 0, %s119
      %s122 = sphi 0, %s121
      %s136 = sphi 0, %s122
      %s140 = sphi 0, %s140
      %s142 = sphi 0, %s140
      %s143 = sphi 0, %s142
      %s157 = sphi 0, %s143
      %s161 = sphi 0, %s161
      %s163 = sphi 0, %s161
      %s164 = sphi 0, %s163
      %s178 = sphi 0, %s164
      %s182 = sphi 0, %s182
      %s184 = sphi 0, %s182
      %s185 = sphi 0, %s184
      %s199 = sphi 0, %s185
      %s203 = sphi 0, %s203
      %s205 = sphi 0, %s203
      %s206 = sphi 0, %s205
      %s220 = sphi 0, %s206
      %s224 = sphi 0, %s224
      %s226 = sphi 0, %s224
      %s227 = sphi 0, %s226
      %s241 = sphi 0, %s227
      %s245 = sphi 0, %s245
      %s247 = sphi 0, %s245
      %s248 = sphi 0, %s247
      %s262 = sphi 0, %s248
      %s266 = sphi 0, %s266
      %s268 = sphi 0, %s266
      %s269 = sphi 0, %s268
      %s283 = sphi 0, %s269
      %s287 = sphi 0, %s287
      %s289 = sphi 0, %s287
      %s290 = sphi 0, %s289
      %s304 = sphi 0, %s290
      %s310 = sphi 0, %s312
      %s313 = sphi 0, %s310
      %s314 = sphi 0, %s313
      %s330 = sphi 0, %s314
    $region4: #{small_cnn_forward.1} parent=1 // loop_header_branch
      %25 = sbr.rel (%p23) target = $region8
    $region5: #{small_cnn_forward.1} parent=1 // loop_body
      %s27 = ssub.s32 %s22, 1
      %s28 = ssub.s32 %s22, 2
      %s29 = sadd.s32 %s22, 1
      %s30 = ssub.s32 %s22, %s29
      %p31 = scmp.eq.s32.totalorder %s30, 0
      %s33 = sadd.s32 %s32, 1
      %s34 = scalar_select %p31, %s32, %s33
      %p37 = pneg %p31
      %p38 = scmp.eq.s32.totalorder %s22, 1
      %p39 = por %p37, %p38
      %p40 = scmp.ne.s32.totalorder %s32, %s35
      %p41 = scmp.eq.s32.totalorder %s22, 0
      %p42 = por %p40, %p41
      %p43 = scmp.ne.s32.totalorder %s32, %s35
      %p44 = scmp.eq.s32.totalorder %s27, 1
      %p45 = por %p43, %p44
      %p46 = scmp.ne.s32.totalorder %s35, %s36
      %p47 = scmp.eq.s32.totalorder %s27, 0
      %p48 = por %p46, %p47
      %p49 = scmp.ne.s32.totalorder %s35, %s36
      %p50 = scmp.eq.s32.totalorder %s28, 1
      %p51 = por %p49, %p50
      %p53 = scmp.ne.s32.totalorder %s36, %s52
      %p54 = scmp.eq.s32.totalorder %s28, 0
      %p55 = por %p53, %p54
      %s57 = sadd.s32 %s56, 1
      %p60 = scmp.eq.s32.totalorder %s22, 1
      %p61 = scmp.ne.s32.totalorder %s56, %s58
      %p62 = scmp.eq.s32.totalorder %s22, 0
      %p63 = por %p61, %p62
      %p64 = scmp.ne.s32.totalorder %s56, %s58
      %p65 = scmp.eq.s32.totalorder %s27, 1
      %p66 = por %p64, %p65
      %p67 = scmp.ne.s32.totalorder %s58, %s59
      %p68 = scmp.eq.s32.totalorder %s27, 0
      %p69 = por %p67, %p68
      %p70 = scmp.ne.s32.totalorder %s58, %s59
      %p71 = scmp.eq.s32.totalorder %s28, 1
      %p72 = por %p70, %p71
      %p74 = scmp.ne.s32.totalorder %s59, %s73
      %p75 = scmp.eq.s32.totalorder %s28, 0
      %p76 = por %p74, %p75
      %s78 = sadd.s32 %s77, 1
      %p81 = scmp.eq.s32.totalorder %s22, 1
      %p82 = scmp.ne.s32.totalorder %s77, %s79
      %p83 = scmp.eq.s32.totalorder %s22, 0
      %p84 = por %p82, %p83
      %p85 = scmp.ne.s32.totalorder %s77, %s79
      %p86 = scmp.eq.s32.totalorder %s27, 1
      %p87 = por %p85, %p86
      %p88 = scmp.ne.s32.totalorder %s79, %s80
      %p89 = scmp.eq.s32.totalorder %s27, 0
      %p90 = por %p88, %p89
      %p91 = scmp.ne.s32.totalorder %s79, %s80
      %p92 = scmp.eq.s32.totalorder %s28, 1
      %p93 = por %p91, %p92
      %p95 = scmp.ne.s32.totalorder %s80, %s94
      %p96 = scmp.eq.s32.totalorder %s28, 0
      %p97 = por %p95, %p96
      %s99 = sadd.s32 %s98, 1
      %p102 = scmp.eq.s32.totalorder %s22, 1
      %p103 = scmp.ne.s32.totalorder %s98, %s100
      %p104 = scmp.eq.s32.totalorder %s22, 0
      %p105 = por %p103, %p104
      %p106 = scmp.ne.s32.totalorder %s98, %s100
      %p107 = scmp.eq.s32.totalorder %s27, 1
      %p108 = por %p106, %p107
      %p109 = scmp.ne.s32.totalorder %s100, %s101
      %p110 = scmp.eq.s32.totalorder %s27, 0
      %p111 = por %p109, %p110
      %p112 = scmp.ne.s32.totalorder %s100, %s101
      %p113 = scmp.eq.s32.totalorder %s28, 1
      %p114 = por %p112, %p113
      %p116 = scmp.ne.s32.totalorder %s101, %s115
      %p117 = scmp.eq.s32.totalorder %s28, 0
      %p118 = por %p116, %p117
      %s120 = sadd.s32 %s119, 1
      %p123 = scmp.eq.s32.totalorder %s22, 1
      %p124 = scmp.ne.s32.totalorder %s119, %s121
      %p125 = scmp.eq.s32.totalorder %s22, 0
      %p126 = por %p124, %p125
      %p127 = scmp.ne.s32.totalorder %s119, %s121
      %p128 = scmp.eq.s32.totalorder %s27, 1
      %p129 = por %p127, %p128
      %p130 = scmp.ne.s32.totalorder %s121, %s122
      %p131 = scmp.eq.s32.totalorder %s27, 0
      %p132 = por %p130, %p131
      %p133 = scmp.ne.s32.totalorder %s121, %s122
      %p134 = scmp.eq.s32.totalorder %s28, 1
      %p135 = por %p133, %p134
      %p137 = scmp.ne.s32.totalorder %s122, %s136
      %p138 = scmp.eq.s32.totalorder %s28, 0
      %p139 = por %p137, %p138
      %s141 = sadd.s32 %s140, 1
      %p144 = scmp.eq.s32.totalorder %s22, 1
      %p145 = scmp.ne.s32.totalorder %s140, %s142
      %p146 = scmp.eq.s32.totalorder %s22, 0
      %p147 = por %p145, %p146
      %p148 = scmp.ne.s32.totalorder %s140, %s142
      %p149 = scmp.eq.s32.totalorder %s27, 1
      %p150 = por %p148, %p149
      %p151 = scmp.ne.s32.totalorder %s142, %s143
      %p152 = scmp.eq.s32.totalorder %s27, 0
      %p153 = por %p151, %p152
      %p154 = scmp.ne.s32.totalorder %s142, %s143
      %p155 = scmp.eq.s32.totalorder %s28, 1
      %p156 = por %p154, %p155
      %p158 = scmp.ne.s32.totalorder %s143, %s157
      %p159 = scmp.eq.s32.totalorder %s28, 0
      %p160 = por %p158, %p159
      %s162 = sadd.s32 %s161, 1
      %p165 = scmp.eq.s32.totalorder %s22, 1
      %p166 = scmp.ne.s32.totalorder %s161, %s163
      %p167 = scmp.eq.s32.totalorder %s22, 0
      %p168 = por %p166, %p167
      %p169 = scmp.ne.s32.totalorder %s161, %s163
      %p170 = scmp.eq.s32.totalorder %s27, 1
      %p171 = por %p169, %p170
      %p172 = scmp.ne.s32.totalorder %s163, %s164
      %p173 = scmp.eq.s32.totalorder %s27, 0
      %p174 = por %p172, %p173
      %p175 = scmp.ne.s32.totalorder %s163, %s164
      %p176 = scmp.eq.s32.totalorder %s28, 1
      %p177 = por %p175, %p176
      %p179 = scmp.ne.s32.totalorder %s164, %s178
      %p180 = scmp.eq.s32.totalorder %s28, 0
      %p181 = por %p179, %p180
      %s183 = sadd.s32 %s182, 1
      %p186 = scmp.eq.s32.totalorder %s22, 1
      %p187 = scmp.ne.s32.totalorder %s182, %s184
      %p188 = scmp.eq.s32.totalorder %s22, 0
      %p189 = por %p187, %p188
      %p190 = scmp.ne.s32.totalorder %s182, %s184
      %p191 = scmp.eq.s32.totalorder %s27, 1
      %p192 = por %p190, %p191
      %p193 = scmp.ne.s32.totalorder %s184, %s185
      %p194 = scmp.eq.s32.totalorder %s27, 0
      %p195 = por %p193, %p194
      %p196 = scmp.ne.s32.totalorder %s184, %s185
      %p197 = scmp.eq.s32.totalorder %s28, 1
      %p198 = por %p196, %p197
      %p200 = scmp.ne.s32.totalorder %s185, %s199
      %p201 = scmp.eq.s32.totalorder %s28, 0
      %p202 = por %p200, %p201
      %s204 = sadd.s32 %s203, 1
      %p207 = scmp.eq.s32.totalorder %s22, 1
      %p208 = scmp.ne.s32.totalorder %s203, %s205
      %p209 = scmp.eq.s32.totalorder %s22, 0
      %p210 = por %p208, %p209
      %p211 = scmp.ne.s32.totalorder %s203, %s205
      %p212 = scmp.eq.s32.totalorder %s27, 1
      %p213 = por %p211, %p212
      %p214 = scmp.ne.s32.totalorder %s205, %s206
      %p215 = scmp.eq.s32.totalorder %s27, 0
      %p216 = por %p214, %p215
      %p217 = scmp.ne.s32.totalorder %s205, %s206
      %p218 = scmp.eq.s32.totalorder %s28, 1
      %p219 = por %p217, %p218
      %p221 = scmp.ne.s32.totalorder %s206, %s220
      %p222 = scmp.eq.s32.totalorder %s28, 0
      %p223 = por %p221, %p222
      %s225 = sadd.s32 %s224, 1
      %p228 = scmp.eq.s32.totalorder %s22, 1
      %p229 = scmp.ne.s32.totalorder %s224, %s226
      %p230 = scmp.eq.s32.totalorder %s22, 0
      %p231 = por %p229, %p230
      %p232 = scmp.ne.s32.totalorder %s224, %s226
      %p233 = scmp.eq.s32.totalorder %s27, 1
      %p234 = por %p232, %p233
      %p235 = scmp.ne.s32.totalorder %s226, %s227
      %p236 = scmp.eq.s32.totalorder %s27, 0
      %p237 = por %p235, %p236
      %p238 = scmp.ne.s32.totalorder %s226, %s227
      %p239 = scmp.eq.s32.totalorder %s28, 1
      %p240 = por %p238, %p239
      %p242 = scmp.ne.s32.totalorder %s227, %s241
      %p243 = scmp.eq.s32.totalorder %s28, 0
      %p244 = por %p242, %p243
      %s246 = sadd.s32 %s245, 1
      %p249 = scmp.eq.s32.totalorder %s22, 1
      %p250 = scmp.ne.s32.totalorder %s245, %s247
      %p251 = scmp.eq.s32.totalorder %s22, 0
      %p252 = por %p250, %p251
      %p253 = scmp.ne.s32.totalorder %s245, %s247
      %p254 = scmp.eq.s32.totalorder %s27, 1
      %p255 = por %p253, %p254
      %p256 = scmp.ne.s32.totalorder %s247, %s248
      %p257 = scmp.eq.s32.totalorder %s27, 0
      %p258 = por %p256, %p257
      %p259 = scmp.ne.s32.totalorder %s247, %s248
      %p260 = scmp.eq.s32.totalorder %s28, 1
      %p261 = por %p259, %p260
      %p263 = scmp.ne.s32.totalorder %s248, %s262
      %p264 = scmp.eq.s32.totalorder %s28, 0
      %p265 = por %p263, %p264
      %s267 = sadd.s32 %s266, 1
      %p270 = scmp.eq.s32.totalorder %s22, 1
      %p271 = scmp.ne.s32.totalorder %s266, %s268
      %p272 = scmp.eq.s32.totalorder %s22, 0
      %p273 = por %p271, %p272
      %p274 = scmp.ne.s32.totalorder %s266, %s268
      %p275 = scmp.eq.s32.totalorder %s27, 1
      %p276 = por %p274, %p275
      %p277 = scmp.ne.s32.totalorder %s268, %s269
      %p278 = scmp.eq.s32.totalorder %s27, 0
      %p279 = por %p277, %p278
      %p280 = scmp.ne.s32.totalorder %s268, %s269
      %p281 = scmp.eq.s32.totalorder %s28, 1
      %p282 = por %p280, %p281
      %p284 = scmp.ne.s32.totalorder %s269, %s283
      %p285 = scmp.eq.s32.totalorder %s28, 0
      %p286 = por %p284, %p285
      %s288 = sadd.s32 %s287, 1
      %p291 = scmp.eq.s32.totalorder %s22, 1
      %p292 = scmp.ne.s32.totalorder %s287, %s289
      %p293 = scmp.eq.s32.totalorder %s22, 0
      %p294 = por %p292, %p293
      %p295 = scmp.ne.s32.totalorder %s287, %s289
      %p296 = scmp.eq.s32.totalorder %s27, 1
      %p297 = por %p295, %p296
      %p298 = scmp.ne.s32.totalorder %s289, %s290
      %p299 = scmp.eq.s32.totalorder %s27, 0
      %p300 = por %p298, %p299
      %p301 = scmp.ne.s32.totalorder %s289, %s290
      %p302 = scmp.eq.s32.totalorder %s28, 1
      %p303 = por %p301, %p302
      %p305 = scmp.ne.s32.totalorder %s290, %s304
      %p306 = scmp.eq.s32.totalorder %s28, 0
      %p307 = por %p305, %p306
      %s308 = ssub.s32 %s22, %s29
      %p309 = scmp.eq.s32.totalorder %s308, 0
      %s311 = sadd.s32 %s310, 1
      %s312 = scalar_select %p309, %s310, %s311
      %p315 = pneg %p309
      %p316 = scmp.eq.s32.totalorder %s22, 1
      %p317 = por %p315, %p316
      %p318 = scmp.ne.s32.totalorder %s310, %s313
      %p319 = scmp.eq.s32.totalorder %s22, 0
      %p320 = por %p318, %p319
      %p321 = scmp.ne.s32.totalorder %s310, %s313
      %p322 = scmp.eq.s32.totalorder %s27, 1
      %p323 = por %p321, %p322
      %p324 = scmp.ne.s32.totalorder %s313, %s314
      %p325 = scmp.eq.s32.totalorder %s27, 0
      %p326 = por %p324, %p325
      %p327 = scmp.ne.s32.totalorder %s313, %s314
      %p328 = scmp.eq.s32.totalorder %s28, 1
      %p329 = por %p327, %p328
      %p331 = scmp.ne.s32.totalorder %s314, %s330
      %p332 = scmp.eq.s32.totalorder %s28, 0
      %p333 = por %p331, %p332
      %p334 = scmp.le.s32.totalorder 1, %s22
      %p335 = scmp.lt.s32.totalorder %s22, 3
      %p336 = pnand %p334, %p335
      %p337 = pneg %p336
      // Predicated region
      $region9: #{small_cnn_forward.1} parent=5 // pred_check
        _
      $region10: #{small_cnn_forward.1} parent=5 // pred_check_branch
        %339 = sbr.rel (%p336) target = $region12
      $region11: #{small_cnn_forward.1} parent=5 // pred_region
        %s340 = ssub.s32 %s22, 1
        // Predicated region
        $region13: #{small_cnn_forward.1} parent=11 // pred_check
          %p341 = pneg %p69
        $region14: #{small_cnn_forward.1} parent=11 // pred_check_branch
          %343 = sbr.rel (%p341) target = $region16
        $region15: #{small_cnn_forward.1} parent=11 // pred_region
          _
        $region16: #{small_cnn_forward.1} parent=11 // pred_fallthru
          _
        // Predicated region
        $region17: #{small_cnn_forward.1} parent=11 // pred_check
          %p344 = pneg %p90
        $region18: #{small_cnn_forward.1} parent=11 // pred_check_branch
          %346 = sbr.rel (%p344) target = $region20
        $region19: #{small_cnn_forward.1} parent=11 // pred_region
          _
        $region20: #{small_cnn_forward.1} parent=11 // pred_fallthru
          _
        // Predicated region
        $region21: #{small_cnn_forward.1} parent=11 // pred_check
          %p347 = pneg %p111
        $region22: #{small_cnn_forward.1} parent=11 // pred_check_branch
          %349 = sbr.rel (%p347) target = $region24
        $region23: #{small_cnn_forward.1} parent=11 // pred_region
          _
        $region24: #{small_cnn_forward.1} parent=11 // pred_fallthru
          _
        // Predicated region
        $region25: #{small_cnn_forward.1} parent=11 // pred_check
          %p350 = pneg %p132
        $region26: #{small_cnn_forward.1} parent=11 // pred_check_branch
          %352 = sbr.rel (%p350) target = $region28
        $region27: #{small_cnn_forward.1} parent=11 // pred_region
          _
        $region28: #{small_cnn_forward.1} parent=11 // pred_fallthru
          _
        // Predicated region
        $region29: #{small_cnn_forward.1} parent=11 // pred_check
          %p353 = pneg %p153
        $region30: #{small_cnn_forward.1} parent=11 // pred_check_branch
          %355 = sbr.rel (%p353) target = $region32
        $region31: #{small_cnn_forward.1} parent=11 // pred_region
          _
        $region32: #{small_cnn_forward.1} parent=11 // pred_fallthru
          _
        // Predicated region
        $region33: #{small_cnn_forward.1} parent=11 // pred_check
          %p356 = pneg %p174
        $region34: #{small_cnn_forward.1} parent=11 // pred_check_branch
          %358 = sbr.rel (%p356) target = $region36
        $region35: #{small_cnn_forward.1} parent=11 // pred_region
          _
        $region36: #{small_cnn_forward.1} parent=11 // pred_fallthru
          _
        // Predicated region
        $region37: #{small_cnn_forward.1} parent=11 // pred_check
          %p359 = pneg %p195
        $region38: #{small_cnn_forward.1} parent=11 // pred_check_branch
          %361 = sbr.rel (%p359) target = $region40
        $region39: #{small_cnn_forward.1} parent=11 // pred_region
          _
        $region40: #{small_cnn_forward.1} parent=11 // pred_fallthru
          _
        // Predicated region
        $region41: #{small_cnn_forward.1} parent=11 // pred_check
          %p362 = pneg %p216
        $region42: #{small_cnn_forward.1} parent=11 // pred_check_branch
          %364 = sbr.rel (%p362) target = $region44
        $region43: #{small_cnn_forward.1} parent=11 // pred_region
          _
        $region44: #{small_cnn_forward.1} parent=11 // pred_fallthru
          _
        // Predicated region
        $region45: #{small_cnn_forward.1} parent=11 // pred_check
          %p365 = pneg %p237
        $region46: #{small_cnn_forward.1} parent=11 // pred_check_branch
          %367 = sbr.rel (%p365) target = $region48
        $region47: #{small_cnn_forward.1} parent=11 // pred_region
          _
        $region48: #{small_cnn_forward.1} parent=11 // pred_fallthru
          _
        // Predicated region
        $region49: #{small_cnn_forward.1} parent=11 // pred_check
          %p368 = pneg %p258
        $region50: #{small_cnn_forward.1} parent=11 // pred_check_branch
          %370 = sbr.rel (%p368) target = $region52
        $region51: #{small_cnn_forward.1} parent=11 // pred_region
          _
        $region52: #{small_cnn_forward.1} parent=11 // pred_fallthru
          _
        // Predicated region
        $region53: #{small_cnn_forward.1} parent=11 // pred_check
          %p371 = pneg %p279
        $region54: #{small_cnn_forward.1} parent=11 // pred_check_branch
          %373 = sbr.rel (%p371) target = $region56
        $region55: #{small_cnn_forward.1} parent=11 // pred_region
          _
        $region56: #{small_cnn_forward.1} parent=11 // pred_fallthru
          _
        // Predicated region
        $region57: #{small_cnn_forward.1} parent=11 // pred_check
          %p374 = pneg %p300
        $region58: #{small_cnn_forward.1} parent=11 // pred_check_branch
          %376 = sbr.rel (%p374) target = $region60
        $region59: #{small_cnn_forward.1} parent=11 // pred_region
          _
        $region60: #{small_cnn_forward.1} parent=11 // pred_fallthru
          _
      $region12: #{small_cnn_forward.1} parent=5 // pred_fallthru
        _
      %p377 = scmp.lt.s32.totalorder %s22, 2
      // Predicated region
      $region61: #{small_cnn_forward.1} parent=5 // pred_check
        %p378 = pneg %p377
      $region62: #{small_cnn_forward.1} parent=5 // pred_check_branch
        %380 = sbr.rel (%p378) target = $region64
      $region63: #{small_cnn_forward.1} parent=5 // pred_region
        // Predicated region
        $region65: #{small_cnn_forward.1} parent=63 // pred_check
          %p381 = pneg %p42
        $region66: #{small_cnn_forward.1} parent=63 // pred_check_branch
          %383 = sbr.rel (%p381) target = $region68
        $region67: #{small_cnn_forward.1} parent=63 // pred_region
          %p384 = scmp.lt.s32.totalorder %s22, 1
          %s385 = scalar_select %p384, %s22, 1
          %s386 = smul.addr %s385, 8
          %s387 = smul.addr %s386, 8
          %s388 = scalar_lea.vmem %s0, %s387
        $region68: #{small_cnn_forward.1} parent=63 // pred_fallthru
          _
      $region64: #{small_cnn_forward.1} parent=5 // pred_fallthru
        _
      %p389 = scmp.le.s32.totalorder 1, %s22
      %p390 = scmp.lt.s32.totalorder %s22, 3
      %p391 = pnand %p389, %p390
      %p392 = pneg %p391
      // Predicated region
      $region69: #{small_cnn_forward.1} parent=5 // pred_check
        _
      $region70: #{small_cnn_forward.1} parent=5 // pred_check_branch
        %394 = sbr.rel (%p391) target = $region72
      $region71: #{small_cnn_forward.1} parent=5 // pred_region
        %s395 = ssub.s32 %s22, 1
        %p396 = scmp.lt.s32.totalorder %s27, 1
        %s397 = scalar_select %p396, %s27, 1
        %s398 = smul.addr %s397, 8
        %s399 = smul.addr %s398, 8
        %s400 = scalar_lea.vmem %s0, %s399
        %p401 = pneg %p48
        %p402 = pneg %p45
        %p403 = pneg %p69
        %p404 = pneg %p66
        %p405 = pneg %p90
        %p406 = pneg %p87
        %p407 = pneg %p111
        %p408 = pneg %p108
        %p409 = pneg %p132
        %p410 = pneg %p129
        %p411 = pneg %p153
        %p412 = pneg %p150
        %p413 = pneg %p174
        %p414 = pneg %p171
        %p415 = pneg %p195
        %p416 = pneg %p192
        %p417 = pneg %p216
        %p418 = pneg %p213
        %p419 = pneg %p237
        %p420 = pneg %p234
        %p421 = pneg %p258
        %p422 = pneg %p255
        %p423 = pneg %p279
        %p424 = pneg %p276
        %p425 = pneg %p300
        %p426 = pneg %p297
        %p427 = pneg %p326
        %p428 = pneg %p323
        %s429 = sand.u32 %s313, 1
        %s430 = scalar_lea.sflag [#allocation5], %s429
        %s431 = sand.u32 %s313, 1
        %s432 = scalar_lea.vmem [#allocation4], %s431
        %p433 = scmp.lt.s32.totalorder %s27, 1
        %s434 = scalar_select %p433, %s27, 1
        %s435 = smul.addr %s434, 8
        %s436 = smul.addr %s435, 8
        %s437 = scalar_lea.vmem %s0, %s436
        %vm438 = vcmask 588800
        %439 = vst.msk [vmem:[#allocation2] sm:$0xff] %vm438, 0.0
        %440 = vst.msk [vmem:[#allocation2 + $0x8] sm:$0xff] %vm438, 0.0
        %vm441 = vcmask 582656
        %442 = vst.msk [vmem:[#allocation2 + $0x10] sm:$0x3] %vm441, 0.0
        %v443 = vld [vmem:[%s437] sm:$0xff]
        %v444 = vld [vmem:[%s437 + $0x8] sm:$0xff]
        %447 = vrot.lane.b32.xlu0 %v443, 1
        %v448 = vpop.permute.xlu0 %447
        %449 = vrot.lane.b32.xlu0 %v444, 1
        %v450 = vpop.permute.xlu0 %449
        %vm453 = vcmask 138248
        %454 = vst.msk [vmem:[#allocation2 + $0x1] sm:$0xff] %vm453, %v448
        %455 = vst.msk [vmem:[#allocation2 + $0x9] sm:$0xff] %vm453, %v450
        %s456 = scalar_lea.vmem %s437, 16
        %v457 = vld [vmem:[%s456] sm:$0xff]
        %v458 = vld [vmem:[%s456 + $0x8] sm:$0xff]
        %461 = vrot.lane.b32.xlu0 %v457, 19
        %v462 = vpop.permute.xlu0 %461
        %463 = vrot.lane.b32.xlu0 %v458, 19
        %v464 = vpop.permute.xlu0 %463
        %vm467 = vcmask 285848
        %468 = vst.msk [vmem:[#allocation2 + $0x1] sm:$0xff] %vm467, %v462
        %469 = vst.msk [vmem:[#allocation2 + $0x9] sm:$0xff] %vm467, %v464
        %s470 = scalar_lea.vmem %s437, 32
        %v471 = vld [vmem:[%s470] sm:$0xff]
        %v472 = vld [vmem:[%s470 + $0x8] sm:$0xff]
        %475 = vrot.lane.b32.xlu0 %v471, 37
        %v476 = vpop.permute.xlu0 %475
        %477 = vrot.lane.b32.xlu0 %v472, 37
        %v478 = vpop.permute.xlu0 %477
        %vm481 = vcmask 433448
        %482 = vst.msk [vmem:[#allocation2 + $0x1] sm:$0xff] %vm481, %v476
        %483 = vst.msk [vmem:[#allocation2 + $0x9] sm:$0xff] %vm481, %v478
        %s484 = scalar_lea.vmem %s437, 48
        %v485 = vld [vmem:[%s484] sm:$0xff]
        %v486 = vld [vmem:[%s484 + $0x8] sm:$0xff]
        %489 = vrot.lane.b32.xlu0 %v485, 55
        %v490 = vpop.permute.xlu0 %489
        %491 = vrot.lane.b32.xlu0 %v486, 55
        %v492 = vpop.permute.xlu0 %491
        %vm495 = vcmask 581048
        %496 = vst.msk [vmem:[#allocation2 + $0x1] sm:$0xff] %vm495, %v490
        %497 = vst.msk [vmem:[#allocation2 + $0x9] sm:$0xff] %vm495, %v492
        %v498 = vld [vmem:[#allocation2] sm:$0xff]
        %v499 = vld [vmem:[#allocation2 + $0x8] sm:$0xff]
        %v500 = vld [vmem:[%s1] sm:$0xff]
        %v501 = vld [vmem:[%s1 + $0x8] sm:$0xff]
        %v502 = vld [vmem:[%s1 + $0x10] sm:$0xff]
        %v503 = vld [vmem:[%s1 + $0x18] sm:$0xff]
        %v504 = vld [vmem:[%s1 + $0x20] sm:$0xff]
        %v505 = vld [vmem:[%s1 + $0x28] sm:$0xff]
        %v506 = vld [vmem:[%s1 + $0x30] sm:$0xff]
        %v507 = vld [vmem:[%s1 + $0x38] sm:$0xff]
        %v508 = vld [vmem:[%s1 + $0x40] sm:$0xff]
        %v509 = vld [vmem:[#allocation2 + $0x1] sm:$0xff]
        %v510 = vld [vmem:[#allocation2 + $0x9] sm:$0xff]
        %s511 = scalar_lea.vmem %s1, 72
        %v512 = vld [vmem:[%s511] sm:$0xff]
        %v513 = vld [vmem:[%s511 + $0x8] sm:$0xff]
        %v514 = vld [vmem:[%s511 + $0x10] sm:$0xff]
        %v515 = vld [vmem:[%s511 + $0x18] sm:$0xff]
        %v516 = vld [vmem:[%s511 + $0x20] sm:$0xff]
        %v517 = vld [vmem:[%s511 + $0x28] sm:$0xff]
        %v518 = vld [vmem:[%s511 + $0x30] sm:$0xff]
        %v519 = vld [vmem:[%s511 + $0x38] sm:$0xff]
        %v520 = vld [vmem:[%s511 + $0x40] sm:$0xff]
        %v522 = vsel %vm438, %v509, 0
        %v525 = vsel %vm438, %v510, 0
        %527 = vmatprep.subr.mxu0 0.0
        %528 = vmatpush1.msra.mxu0 %v512
        %529 = vmatprep.subr.mxu0 0.0
        %530 = vmatpush1.msra.mxu0 %v513
        %531 = vmatprep.subr.mxu0 0.0
        %532 = vmatpush1.msra.mxu0 %v514
        %533 = vmatprep.subr.mxu0 0.0
        %534 = vmatpush1.msra.mxu0 %v515
        %535 = vmatprep.subr.mxu0 0.0
        %536 = vmatpush1.msra.mxu0 %v516
        %537 = vmatprep.subr.mxu0 0.0
        %538 = vmatpush1.msra.mxu0 %v517
        %539 = vmatprep.subr.mxu0 0.0
        %540 = vmatpush1.msra.mxu0 %v518
        %541 = vmatprep.subr.mxu0 0.0
        %542 = vmatpush1.msra.mxu0 %v519
        %543 = vmatprep.subr.mxu0 0.0
        %544 = vmatpush1.msra.mxu0 %v520
        %545 = vmatprep.subr.mxu0 0.0
        %546 = vmatpush1.msra.mxu0 0.0
        %547 = vmatprep.subr.mxu0 0.0
        %548 = vmatpush1.msra.mxu0 0.0
        %549 = vmatprep.subr.mxu0 0.0
        %550 = vmatpush1.msra.mxu0 0.0
        %551 = vmatprep.subr.mxu0 0.0
        %552 = vmatpush1.msra.mxu0 0.0
        %553 = vmatprep.subr.mxu0 0.0
        %554 = vmatpush1.msra.mxu0 0.0
        %555 = vmatprep.subr.mxu0 0.0
        %556 = vmatpush1.msra.mxu0 0.0
        %557 = vmatprep.subr.mxu0 0.0
        %558 = vmatpush1.msra.mxu0 0.0
        %559 = vmatprep.subr.mxu0 0.0
        %560 = vmatpush1.msra.mxu0 0.0
        %561 = vmatprep.subr.mxu0 0.0
        %562 = vmatpush1.msra.mxu0 0.0
        %563 = vmatprep.subr.mxu0 0.0
        %564 = vmatpush1.msra.mxu0 0.0
        %565 = vmatprep.subr.mxu0 0.0
        %566 = vmatpush1.msra.mxu0 0.0
        %567 = vmatprep.subr.mxu0 0.0
        %568 = vmatpush1.msra.mxu0 0.0
        %569 = vmatprep.subr.mxu0 0.0
        %570 = vmatpush1.msra.mxu0 0.0
        %571 = vmatprep.subr.mxu0 0.0
        %572 = vmatpush1.msra.mxu0 0.0
        %573 = vmatprep.subr.mxu0 0.0
        %574 = vmatpush1.msra.mxu0 0.0
        %575 = vmatprep.subr.mxu0 0.0
        %576 = vmatpush1.msra.mxu0 0.0
        %577 = vmatprep.subr.mxu0 0.0
        %578 = vmatpush1.msra.mxu0 0.0
        %579 = vmatprep.subr.mxu0 0.0
        %580 = vmatpush1.msra.mxu0 0.0
        %581 = vmatprep.subr.mxu0 0.0
        %582 = vmatpush1.msra.mxu0 0.0
        %583 = vmatprep.subr.mxu0 0.0
        %584 = vmatpush1.msra.mxu0 0.0
        %585 = vmatprep.subr.mxu0 0.0
        %586 = vmatpush1.msra.mxu0 0.0
        %587 = vmatprep.subr.mxu0 0.0
        %588 = vmatpush1.msra.mxu0 0.0
        %589 = vmatprep.subr.mxu0 0.0
        %590 = vmatpush1.msra.mxu0 0.0
        %591 = vmatprep.mubr.f32.mxu0 0.0
        %592 = vmatmul.mubr.f32.gmra.mrb[0].mxu0 %v522
        %v593 = vpop.f32.mrb[0].mxu0
        %v594 = vadd.f32 0.0, %v593
        %v595 = vpop.f32.mrb[0].mxu0
        %596 = vmatprep.mubr.f32.mxu0 0.0
        %597 = vmatmul.mubr.f32.gmra.mrb[0].mxu0 %v525
        %v598 = vpop.f32.mrb[0].mxu0
        %v599 = vadd.f32 0.0, %v598
        %v600 = vpop.f32.mrb[0].mxu0
        %601 = vdwg.mxu0
        %v603 = vsel %vm438, %v498, 0
        %v606 = vsel %vm438, %v499, 0
        %608 = vmatprep.subr.mxu0 0.0
        %609 = vmatpush1.msra.mxu0 %v500
        %610 = vmatprep.subr.mxu0 0.0
        %611 = vmatpush1.msra.mxu0 %v501
        %612 = vmatprep.subr.mxu0 0.0
        %613 = vmatpush1.msra.mxu0 %v502
        %614 = vmatprep.subr.mxu0 0.0
        %615 = vmatpush1.msra.mxu0 %v503
        %616 = vmatprep.subr.mxu0 0.0
        %617 = vmatpush1.msra.mxu0 %v504
        %618 = vmatprep.subr.mxu0 0.0
        %619 = vmatpush1.msra.mxu0 %v505
        %620 = vmatprep.subr.mxu0 0.0
        %621 = vmatpush1.msra.mxu0 %v506
        %622 = vmatprep.subr.mxu0 0.0
        %623 = vmatpush1.msra.mxu0 %v507
        %624 = vmatprep.subr.mxu0 0.0
        %625 = vmatpush1.msra.mxu0 %v508
        %626 = vmatprep.subr.mxu0 0.0
        %627 = vmatpush1.msra.mxu0 0.0
        %628 = vmatprep.subr.mxu0 0.0
        %629 = vmatpush1.msra.mxu0 0.0
        %630 = vmatprep.subr.mxu0 0.0
        %631 = vmatpush1.msra.mxu0 0.0
        %632 = vmatprep.subr.mxu0 0.0
        %633 = vmatpush1.msra.mxu0 0.0
        %634 = vmatprep.subr.mxu0 0.0
        %635 = vmatpush1.msra.mxu0 0.0
        %636 = vmatprep.subr.mxu0 0.0
        %637 = vmatpush1.msra.mxu0 0.0
        %638 = vmatprep.subr.mxu0 0.0
        %639 = vmatpush1.msra.mxu0 0.0
        %640 = vmatprep.subr.mxu0 0.0
        %641 = vmatpush1.msra.mxu0 0.0
        %642 = vmatprep.subr.mxu0 0.0
        %643 = vmatpush1.msra.mxu0 0.0
        %644 = vmatprep.subr.mxu0 0.0
        %645 = vmatpush1.msra.mxu0 0.0
        %646 = vmatprep.subr.mxu0 0.0
        %647 = vmatpush1.msra.mxu0 0.0
        %648 = vmatprep.subr.mxu0 0.0
        %649 = vmatpush1.msra.mxu0 0.0
        %650 = vmatprep.subr.mxu0 0.0
        %651 = vmatpush1.msra.mxu0 0.0
        %652 = vmatprep.subr.mxu0 0.0
        %653 = vmatpush1.msra.mxu0 0.0
        %654 = vmatprep.subr.mxu0 0.0
        %655 = vmatpush1.msra.mxu0 0.0
        %656 = vmatprep.subr.mxu0 0.0
        %657 = vmatpush1.msra.mxu0 0.0
        %658 = vmatprep.subr.mxu0 0.0
        %659 = vmatpush1.msra.mxu0 0.0
        %660 = vmatprep.subr.mxu0 0.0
        %661 = vmatpush1.msra.mxu0 0.0
        %662 = vmatprep.subr.mxu0 0.0
        %663 = vmatpush1.msra.mxu0 0.0
        %664 = vmatprep.subr.mxu0 0.0
        %665 = vmatpush1.msra.mxu0 0.0
        %666 = vmatprep.subr.mxu0 0.0
        %667 = vmatpush1.msra.mxu0 0.0
        %668 = vmatprep.subr.mxu0 0.0
        %669 = vmatpush1.msra.mxu0 0.0
        %670 = vmatprep.subr.mxu0 0.0
        %671 = vmatpush1.msra.mxu0 0.0
        %672 = vmatprep.mubr.f32.mxu0 0.0
        %673 = vmatmul.mubr.f32.gmra.mrb[0].mxu0 %v603
        %v674 = vpop.f32.mrb[0].mxu0
        %v675 = vadd.f32 %v594, %v674
        %v676 = vpop.f32.mrb[0].mxu0
        %677 = vmatprep.mubr.f32.mxu0 0.0
        %678 = vmatmul.mubr.f32.gmra.mrb[0].mxu0 %v606
        %v679 = vpop.f32.mrb[0].mxu0
        %v680 = vadd.f32 %v599, %v679
        %v681 = vpop.f32.mrb[0].mxu0
        %682 = vdwg.mxu0
        %v683 = vld [vmem:[#allocation2 + $0x2] sm:$0xff]
        %v684 = vld [vmem:[#allocation2 + $0xa] sm:$0xff]
        %s685 = scalar_lea.vmem %s1, 144
        %v686 = vld [vmem:[%s685] sm:$0xff]
        %v687 = vld [vmem:[%s685 + $0x8] sm:$0xff]
        %v688 = vld [vmem:[%s685 + $0x10] sm:$0xff]
        %v689 = vld [vmem:[%s685 + $0x18] sm:$0xff]
        %v690 = vld [vmem:[%s685 + $0x20] sm:$0xff]
        %v691 = vld [vmem:[%s685 + $0x28] sm:$0xff]
        %v692 = vld [vmem:[%s685 + $0x30] sm:$0xff]
        %v693 = vld [vmem:[%s685 + $0x38] sm:$0xff]
        %v694 = vld [vmem:[%s685 + $0x40] sm:$0xff]
        %v696 = vsel %vm438, %v683, 0
        %v699 = vsel %vm438, %v684, 0
        %701 = vmatprep.subr.mxu0 0.0
        %702 = vmatpush1.msra.mxu0 %v686
        %703 = vmatprep.subr.mxu0 0.0
        %704 = vmatpush1.msra.mxu0 %v687
        %705 = vmatprep.subr.mxu0 0.0
        %706 = vmatpush1.msra.mxu0 %v688
        %707 = vmatprep.subr.mxu0 0.0
        %708 = vmatpush1.msra.mxu0 %v689
        %709 = vmatprep.subr.mxu0 0.0
        %710 = vmatpush1.msra.mxu0 %v690
        %711 = vmatprep.subr.mxu0 0.0
        %712 = vmatpush1.msra.mxu0 %v691
        %713 = vmatprep.subr.mxu0 0.0
        %714 = vmatpush1.msra.mxu0 %v692
        %715 = vmatprep.subr.mxu0 0.0
        %716 = vmatpush1.msra.mxu0 %v693
        %717 = vmatprep.subr.mxu0 0.0
        %718 = vmatpush1.msra.mxu0 %v694
        %719 = vmatprep.subr.mxu0 0.0
        %720 = vmatpush1.msra.mxu0 0.0
        %721 = vmatprep.subr.mxu0 0.0
        %722 = vmatpush1.msra.mxu0 0.0
        %723 = vmatprep.subr.mxu0 0.0
        %724 = vmatpush1.msra.mxu0 0.0
        %725 = vmatprep.subr.mxu0 0.0
        %726 = vmatpush1.msra.mxu0 0.0
        %727 = vmatprep.subr.mxu0 0.0
        %728 = vmatpush1.msra.mxu0 0.0
        %729 = vmatprep.subr.mxu0 0.0
        %730 = vmatpush1.msra.mxu0 0.0
        %731 = vmatprep.subr.mxu0 0.0
        %732 = vmatpush1.msra.mxu0 0.0
        %733 = vmatprep.subr.mxu0 0.0
        %734 = vmatpush1.msra.mxu0 0.0
        %735 = vmatprep.subr.mxu0 0.0
        %736 = vmatpush1.msra.mxu0 0.0
        %737 = vmatprep.subr.mxu0 0.0
        %738 = vmatpush1.msra.mxu0 0.0
        %739 = vmatprep.subr.mxu0 0.0
        %740 = vmatpush1.msra.mxu0 0.0
        %741 = vmatprep.subr.mxu0 0.0
        %742 = vmatpush1.msra.mxu0 0.0
        %743 = vmatprep.subr.mxu0 0.0
        %744 = vmatpush1.msra.mxu0 0.0
        %745 = vmatprep.subr.mxu0 0.0
        %746 = vmatpush1.msra.mxu0 0.0
        %747 = vmatprep.subr.mxu0 0.0
        %748 = vmatpush1.msra.mxu0 0.0
        %749 = vmatprep.subr.mxu0 0.0
        %750 = vmatpush1.msra.mxu0 0.0
        %751 = vmatprep.subr.mxu0 0.0
        %752 = vmatpush1.msra.mxu0 0.0
        %753 = vmatprep.subr.mxu0 0.0
        %754 = vmatpush1.msra.mxu0 0.0
        %755 = vmatprep.subr.mxu0 0.0
        %756 = vmatpush1.msra.mxu0 0.0
        %757 = vmatprep.subr.mxu0 0.0
        %758 = vmatpush1.msra.mxu0 0.0
        %759 = vmatprep.subr.mxu0 0.0
        %760 = vmatpush1.msra.mxu0 0.0
        %761 = vmatprep.subr.mxu0 0.0
        %762 = vmatpush1.msra.mxu0 0.0
        %763 = vmatprep.subr.mxu0 0.0
        %764 = vmatpush1.msra.mxu0 0.0
        %765 = vmatprep.mubr.f32.mxu0 0.0
        %766 = vmatmul.mubr.f32.gmra.mrb[0].mxu0 %v696
        %v767 = vpop.f32.mrb[0].mxu0
        %v768 = vadd.f32 0.0, %v767
        %v769 = vpop.f32.mrb[0].mxu0
        %770 = vmatprep.mubr.f32.mxu0 0.0
        %771 = vmatmul.mubr.f32.gmra.mrb[0].mxu0 %v699
        %v772 = vpop.f32.mrb[0].mxu0
        %v773 = vadd.f32 0.0, %v772
        %v774 = vpop.f32.mrb[0].mxu0
        %775 = vdwg.mxu0
        %v776 = vadd.f32 %v675, %v768
        %v777 = vadd.f32 %v680, %v773
        %v778 = vld [vmem:[%s2] sm:$0x1]
        %v780 = vlaneseq
        %v781 = vshrl.u32 %v780, 7
        %v782 = vsub.s32 0, %v781
        %v783 = vrot.slane %v778, %v782
        %v785 = vadd.f32 %v776, %v783
        %v786 = vadd.f32 %v777, %v783
        %v787 = vmax.f32 %v785, 0.0
        %v788 = vmax.f32 %v786, 0.0
        %791 = vrot.lane.b32.xlu0 %v787, 120
        %v792 = vpop.permute.xlu0 %791
        %793 = vrot.lane.b32.xlu0 %v788, 120
        %v794 = vpop.permute.xlu0 %793
        %v797 = vmax.f32 %v787, %v792
        %v798 = vmax.f32 %v788, %v794
        %vm801 = vcmask 1046528
        %v802 = vrot.slane %v797, 1
        %v803 = vrot.slane %v798, 1
        %v804 = vsel %vm801, %v802, %v803
        %v807 = vmax.f32 %v797, %v804
        %v808 = vmax.f32 %v798, %v803
        %v809 = vld [vmem:[%s3] sm:$0xff]
        %vm810 = vcmask 121856
        %v812 = vsel %vm810, %v809, 0
        %v815 = vsel %vm801, %v808, 0
        %817 = vmatprep.subr.mxu0 0.0
        %818 = vmatpush1.msra.mxu0 %v807
        %819 = vmatprep.subr.mxu0 0.0
        %820 = vmatpush1.msra.mxu0 %v815
        %821 = vmatprep.subr.mxu0 0.0
        %822 = vmatpush1.msra.mxu0 0.0
        %823 = vmatprep.subr.mxu0 0.0
        %824 = vmatpush1.msra.mxu0 0.0
        %825 = vmatprep.subr.mxu0 0.0
        %826 = vmatpush1.msra.mxu0 0.0
        %827 = vmatprep.subr.mxu0 0.0
        %828 = vmatpush1.msra.mxu0 0.0
        %829 = vmatprep.subr.mxu0 0.0
        %830 = vmatpush1.msra.mxu0 0.0
        %831 = vmatprep.subr.mxu0 0.0
        %832 = vmatpush1.msra.mxu0 0.0
        %833 = vmatprep.subr.mxu0 0.0
        %834 = vmatpush1.msra.mxu0 0.0
        %835 = vmatprep.subr.mxu0 0.0
        %836 = vmatpush1.msra.mxu0 0.0
        %837 = vmatprep.subr.mxu0 0.0
        %838 = vmatpush1.msra.mxu0 0.0
        %839 = vmatprep.subr.mxu0 0.0
        %840 = vmatpush1.msra.mxu0 0.0
        %841 = vmatprep.subr.mxu0 0.0
        %842 = vmatpush1.msra.mxu0 0.0
        %843 = vmatprep.subr.mxu0 0.0
        %844 = vmatpush1.msra.mxu0 0.0
        %845 = vmatprep.subr.mxu0 0.0
        %846 = vmatpush1.msra.mxu0 0.0
        %847 = vmatprep.subr.mxu0 0.0
        %848 = vmatpush1.msra.mxu0 0.0
        %849 = vmatprep.subr.mxu0 0.0
        %850 = vmatpush1.msra.mxu0 0.0
        %851 = vmatprep.subr.mxu0 0.0
        %852 = vmatpush1.msra.mxu0 0.0
        %853 = vmatprep.subr.mxu0 0.0
        %854 = vmatpush1.msra.mxu0 0.0
        %855 = vmatprep.subr.mxu0 0.0
        %856 = vmatpush1.msra.mxu0 0.0
        %857 = vmatprep.subr.mxu0 0.0
        %858 = vmatpush1.msra.mxu0 0.0
        %859 = vmatprep.subr.mxu0 0.0
        %860 = vmatpush1.msra.mxu0 0.0
        %861 = vmatprep.subr.mxu0 0.0
        %862 = vmatpush1.msra.mxu0 0.0
        %863 = vmatprep.subr.mxu0 0.0
        %864 = vmatpush1.msra.mxu0 0.0
        %865 = vmatprep.subr.mxu0 0.0
        %866 = vmatpush1.msra.mxu0 0.0
        %867 = vmatprep.subr.mxu0 0.0
        %868 = vmatpush1.msra.mxu0 0.0
        %869 = vmatprep.subr.mxu0 0.0
        %870 = vmatpush1.msra.mxu0 0.0
        %871 = vmatprep.subr.mxu0 0.0
        %872 = vmatpush1.msra.mxu0 0.0
        %873 = vmatprep.subr.mxu0 0.0
        %874 = vmatpush1.msra.mxu0 0.0
        %875 = vmatprep.subr.mxu0 0.0
        %876 = vmatpush1.msra.mxu0 0.0
        %877 = vmatprep.subr.mxu0 0.0
        %878 = vmatpush1.msra.mxu0 0.0
        %879 = vmatprep.subr.mxu0 0.0
        %880 = vmatpush1.msra.mxu0 0.0
        %881 = vmatprep.mubr.f32.mxu0 0.0
        %882 = vmatmul.mubr.f32.gmra.mrb[0].mxu0 %v812
        %v883 = vpop.f32.mrb[0].mxu0
        %v884 = vadd.f32 0.0, %v883
        %v885 = vpop.f32.mrb[0].mxu0
        %886 = vdwg.mxu0
        %v887 = vld [vmem:[%s4] sm:$0xff]
        %v888 = vld [vmem:[%s4 + $0x8] sm:$0xff]
        %v889 = vld [vmem:[%s4 + $0x10] sm:$0xff]
        %v890 = vld [vmem:[%s4 + $0x18] sm:$0xff]
        %v891 = vld [vmem:[%s4 + $0x20] sm:$0xff]
        %v892 = vld [vmem:[%s4 + $0x28] sm:$0xff]
        %v893 = vld [vmem:[%s4 + $0x30] sm:$0xff]
        %v894 = vld [vmem:[%s4 + $0x38] sm:$0xff]
        %v895 = vld [vmem:[%s4 + $0x40] sm:$0xff]
        %v896 = vld [vmem:[%s4 + $0x48] sm:$0xff]
        %v897 = vld [vmem:[%s4 + $0x50] sm:$0xff]
        %v898 = vld [vmem:[%s4 + $0x58] sm:$0xff]
        %v899 = vld [vmem:[%s4 + $0x60] sm:$0xff]
        %v900 = vld [vmem:[%s4 + $0x68] sm:$0xff]
        %v901 = vld [vmem:[%s4 + $0x70] sm:$0xff]
        %vm902 = vcmask 982016
        %v904 = vsel %vm902, %v884, 0
        %906 = vmatprep.subr.mxu0 0.0
        %907 = vmatpush1.msra.mxu0 %v887
        %908 = vmatprep.subr.mxu0 0.0
        %909 = vmatpush1.msra.mxu0 %v888
        %910 = vmatprep.subr.mxu0 0.0
        %911 = vmatpush1.msra.mxu0 %v889
        %912 = vmatprep.subr.mxu0 0.0
        %913 = vmatpush1.msra.mxu0 %v890
        %914 = vmatprep.subr.mxu0 0.0
        %915 = vmatpush1.msra.mxu0 %v891
        %916 = vmatprep.subr.mxu0 0.0
        %917 = vmatpush1.msra.mxu0 %v892
        %918 = vmatprep.subr.mxu0 0.0
        %919 = vmatpush1.msra.mxu0 %v893
        %920 = vmatprep.subr.mxu0 0.0
        %921 = vmatpush1.msra.mxu0 %v894
        %922 = vmatprep.subr.mxu0 0.0
        %923 = vmatpush1.msra.mxu0 %v895
        %924 = vmatprep.subr.mxu0 0.0
        %925 = vmatpush1.msra.mxu0 %v896
        %926 = vmatprep.subr.mxu0 0.0
        %927 = vmatpush1.msra.mxu0 %v897
        %928 = vmatprep.subr.mxu0 0.0
        %929 = vmatpush1.msra.mxu0 %v898
        %930 = vmatprep.subr.mxu0 0.0
        %931 = vmatpush1.msra.mxu0 %v899
        %932 = vmatprep.subr.mxu0 0.0
        %933 = vmatpush1.msra.mxu0 %v900
        %934 = vmatprep.subr.mxu0 0.0
        %935 = vmatpush1.msra.mxu0 %v901
        %936 = vmatprep.subr.mxu0 0.0
        %937 = vmatpush1.msra.mxu0 0.0
        %938 = vmatprep.subr.mxu0 0.0
        %939 = vmatpush1.msra.mxu0 0.0
        %940 = vmatprep.subr.mxu0 0.0
        %941 = vmatpush1.msra.mxu0 0.0
        %942 = vmatprep.subr.mxu0 0.0
        %943 = vmatpush1.msra.mxu0 0.0
        %944 = vmatprep.subr.mxu0 0.0
        %945 = vmatpush1.msra.mxu0 0.0
        %946 = vmatprep.subr.mxu0 0.0
        %947 = vmatpush1.msra.mxu0 0.0
        %948 = vmatprep.subr.mxu0 0.0
        %949 = vmatpush1.msra.mxu0 0.0
        %950 = vmatprep.subr.mxu0 0.0
        %951 = vmatpush1.msra.mxu0 0.0
        %952 = vmatprep.subr.mxu0 0.0
        %953 = vmatpush1.msra.mxu0 0.0
        %954 = vmatprep.subr.mxu0 0.0
        %955 = vmatpush1.msra.mxu0 0.0
        %956 = vmatprep.subr.mxu0 0.0
        %957 = vmatpush1.msra.mxu0 0.0
        %958 = vmatprep.subr.mxu0 0.0
        %959 = vmatpush1.msra.mxu0 0.0
        %960 = vmatprep.subr.mxu0 0.0
        %961 = vmatpush1.msra.mxu0 0.0
        %962 = vmatprep.subr.mxu0 0.0
        %963 = vmatpush1.msra.mxu0 0.0
        %964 = vmatprep.subr.mxu0 0.0
        %965 = vmatpush1.msra.mxu0 0.0
        %966 = vmatprep.subr.mxu0 0.0
        %967 = vmatpush1.msra.mxu0 0.0
        %968 = vmatprep.subr.mxu0 0.0
        %969 = vmatpush1.msra.mxu0 0.0
        %970 = vmatprep.mubr.f32.mxu0 0.0
        %971 = vmatmul.mubr.f32.gmra.mrb[0].mxu0 %v904
        %v972 = vpop.f32.mrb[0].mxu0
        %v973 = vadd.f32 0.0, %v972
        %v974 = vpop.f32.mrb[0].mxu0
        %975 = vdwg.mxu0
        %vm976 = vcmask 654336
        %977 = vst.msk [vmem:[#allocation3] sm:$0xff] %vm976, 0.0
        %vm978 = vcmask 648192
        %979 = vst.msk [vmem:[#allocation3 + $0x8] sm:$0x3] %vm978, 0.0
        %981 = vrot.lane.b32.xlu0 %v973, 8
        %v982 = vpop.permute.xlu0 %981
        %vm984 = vcmask 588864
        %985 = vst.msk [vmem:[#allocation3 + $0x1] sm:$0xff] %vm984, %v982
        %v986 = vld [vmem:[#allocation3] sm:$0xff]
        %v987 = vld [vmem:[%s5] sm:$0xff]
        %v988 = vld [vmem:[%s5 + $0x8] sm:$0xff]
        %v989 = vld [vmem:[%s5 + $0x10] sm:$0xff]
        %v990 = vld [vmem:[%s5 + $0x18] sm:$0xff]
        %v991 = vld [vmem:[%s5 + $0x20] sm:$0xff]
        %v992 = vld [vmem:[%s5 + $0x28] sm:$0xff]
        %v993 = vld [vmem:[%s5 + $0x30] sm:$0xff]
        %v994 = vld [vmem:[%s5 + $0x38] sm:$0xff]
        %v995 = vld [vmem:[%s5 + $0x40] sm:$0xff]
        %v996 = vld [vmem:[%s5 + $0x48] sm:$0xff]
        %v997 = vld [vmem:[#allocation3 + $0x1] sm:$0xff]
        %s998 = scalar_lea.vmem %s5, 80
        %v999 = vld [vmem:[%s998] sm:$0xff]
        %v1000 = vld [vmem:[%s998 + $0x8] sm:$0xff]
        %v1001 = vld [vmem:[%s998 + $0x10] sm:$0xff]
        %v1002 = vld [vmem:[%s998 + $0x18] sm:$0xff]
        %v1003 = vld [vmem:[%s998 + $0x20] sm:$0xff]
        %v1004 = vld [vmem:[%s998 + $0x28] sm:$0xff]
        %v1005 = vld [vmem:[%s998 + $0x30] sm:$0xff]
        %v1006 = vld [vmem:[%s998 + $0x38] sm:$0xff]
        %v1007 = vld [vmem:[%s998 + $0x40] sm:$0xff]
        %v1008 = vld [vmem:[%s998 + $0x48] sm:$0xff]
        %v1010 = vsel %vm976, %v997, 0
        %1012 = vmatprep.subr.mxu0 0.0
        %1013 = vmatpush1.msra.mxu0 %v999
        %1014 = vmatprep.subr.mxu0 0.0
        %1015 = vmatpush1.msra.mxu0 %v1000
        %1016 = vmatprep.subr.mxu0 0.0
        %1017 = vmatpush1.msra.mxu0 %v1001
        %1018 = vmatprep.subr.mxu0 0.0
        %1019 = vmatpush1.msra.mxu0 %v1002
        %1020 = vmatprep.subr.mxu0 0.0
        %1021 = vmatpush1.msra.mxu0 %v1003
        %1022 = vmatprep.subr.mxu0 0.0
        %1023 = vmatpush1.msra.mxu0 %v1004
        %1024 = vmatprep.subr.mxu0 0.0
        %1025 = vmatpush1.msra.mxu0 %v1005
        %1026 = vmatprep.subr.mxu0 0.0
        %1027 = vmatpush1.msra.mxu0 %v1006
        %1028 = vmatprep.subr.mxu0 0.0
        %1029 = vmatpush1.msra.mxu0 %v1007
        %1030 = vmatprep.subr.mxu0 0.0
        %1031 = vmatpush1.msra.mxu0 %v1008
        %1032 = vmatprep.subr.mxu0 0.0
        %1033 = vmatpush1.msra.mxu0 0.0
        %1034 = vmatprep.subr.mxu0 0.0
        %1035 = vmatpush1.msra.mxu0 0.0
        %1036 = vmatprep.subr.mxu0 0.0
        %1037 = vmatpush1.msra.mxu0 0.0
        %1038 = vmatprep.subr.mxu0 0.0
        %1039 = vmatpush1.msra.mxu0 0.0
        %1040 = vmatprep.subr.mxu0 0.0
        %1041 = vmatpush1.msra.mxu0 0.0
        %1042 = vmatprep.subr.mxu0 0.0
        %1043 = vmatpush1.msra.mxu0 0.0
        %1044 = vmatprep.subr.mxu0 0.0
        %1045 = vmatpush1.msra.mxu0 0.0
        %1046 = vmatprep.subr.mxu0 0.0
        %1047 = vmatpush1.msra.mxu0 0.0
        %1048 = vmatprep.subr.mxu0 0.0
        %1049 = vmatpush1.msra.mxu0 0.0
        %1050 = vmatprep.subr.mxu0 0.0
        %1051 = vmatpush1.msra.mxu0 0.0
        %1052 = vmatprep.subr.mxu0 0.0
        %1053 = vmatpush1.msra.mxu0 0.0
        %1054 = vmatprep.subr.mxu0 0.0
        %1055 = vmatpush1.msra.mxu0 0.0
        %1056 = vmatprep.subr.mxu0 0.0
        %1057 = vmatpush1.msra.mxu0 0.0
        %1058 = vmatprep.subr.mxu0 0.0
        %1059 = vmatpush1.msra.mxu0 0.0
        %1060 = vmatprep.subr.mxu0 0.0
        %1061 = vmatpush1.msra.mxu0 0.0
        %1062 = vmatprep.subr.mxu0 0.0
        %1063 = vmatpush1.msra.mxu0 0.0
        %1064 = vmatprep.subr.mxu0 0.0
        %1065 = vmatpush1.msra.mxu0 0.0
        %1066 = vmatprep.subr.mxu0 0.0
        %1067 = vmatpush1.msra.mxu0 0.0
        %1068 = vmatprep.subr.mxu0 0.0
        %1069 = vmatpush1.msra.mxu0 0.0
        %1070 = vmatprep.subr.mxu0 0.0
        %1071 = vmatpush1.msra.mxu0 0.0
        %1072 = vmatprep.subr.mxu0 0.0
        %1073 = vmatpush1.msra.mxu0 0.0
        %1074 = vmatprep.subr.mxu0 0.0
        %1075 = vmatpush1.msra.mxu0 0.0
        %1076 = vmatprep.mubr.f32.mxu0 0.0
        %1077 = vmatmul.mubr.f32.gmra.mrb[0].mxu0 %v1010
        %v1078 = vpop.f32.mrb[0].mxu0
        %v1079 = vadd.f32 0.0, %v1078
        %v1080 = vpop.f32.mrb[0].mxu0
        %1081 = vdwg.mxu0
        %v1083 = vsel %vm976, %v986, 0
        %1085 = vmatprep.subr.mxu0 0.0
        %1086 = vmatpush1.msra.mxu0 %v987
        %1087 = vmatprep.subr.mxu0 0.0
        %1088 = vmatpush1.msra.mxu0 %v988
        %1089 = vmatprep.subr.mxu0 0.0
        %1090 = vmatpush1.msra.mxu0 %v989
        %1091 = vmatprep.subr.mxu0 0.0
        %1092 = vmatpush1.msra.mxu0 %v990
        %1093 = vmatprep.subr.mxu0 0.0
        %1094 = vmatpush1.msra.mxu0 %v991
        %1095 = vmatprep.subr.mxu0 0.0
        %1096 = vmatpush1.msra.mxu0 %v992
        %1097 = vmatprep.subr.mxu0 0.0
        %1098 = vmatpush1.msra.mxu0 %v993
        %1099 = vmatprep.subr.mxu0 0.0
        %1100 = vmatpush1.msra.mxu0 %v994
        %1101 = vmatprep.subr.mxu0 0.0
        %1102 = vmatpush1.msra.mxu0 %v995
        %1103 = vmatprep.subr.mxu0 0.0
        %1104 = vmatpush1.msra.mxu0 %v996
        %1105 = vmatprep.subr.mxu0 0.0
        %1106 = vmatpush1.msra.mxu0 0.0
        %1107 = vmatprep.subr.mxu0 0.0
        %1108 = vmatpush1.msra.mxu0 0.0
        %1109 = vmatprep.subr.mxu0 0.0
        %1110 = vmatpush1.msra.mxu0 0.0
        %1111 = vmatprep.subr.mxu0 0.0
        %1112 = vmatpush1.msra.mxu0 0.0
        %1113 = vmatprep.subr.mxu0 0.0
        %1114 = vmatpush1.msra.mxu0 0.0
        %1115 = vmatprep.subr.mxu0 0.0
        %1116 = vmatpush1.msra.mxu0 0.0
        %1117 = vmatprep.subr.mxu0 0.0
        %1118 = vmatpush1.msra.mxu0 0.0
        %1119 = vmatprep.subr.mxu0 0.0
        %1120 = vmatpush1.msra.mxu0 0.0
        %1121 = vmatprep.subr.mxu0 0.0
        %1122 = vmatpush1.msra.mxu0 0.0
        %1123 = vmatprep.subr.mxu0 0.0
        %1124 = vmatpush1.msra.mxu0 0.0
        %1125 = vmatprep.subr.mxu0 0.0
        %1126 = vmatpush1.msra.mxu0 0.0
        %1127 = vmatprep.subr.mxu0 0.0
        %1128 = vmatpush1.msra.mxu0 0.0
        %1129 = vmatprep.subr.mxu0 0.0
        %1130 = vmatpush1.msra.mxu0 0.0
        %1131 = vmatprep.subr.mxu0 0.0
        %1132 = vmatpush1.msra.mxu0 0.0
        %1133 = vmatprep.subr.mxu0 0.0
        %1134 = vmatpush1.msra.mxu0 0.0
        %1135 = vmatprep.subr.mxu0 0.0
        %1136 = vmatpush1.msra.mxu0 0.0
        %1137 = vmatprep.subr.mxu0 0.0
        %1138 = vmatpush1.msra.mxu0 0.0
        %1139 = vmatprep.subr.mxu0 0.0
        %1140 = vmatpush1.msra.mxu0 0.0
        %1141 = vmatprep.subr.mxu0 0.0
        %1142 = vmatpush1.msra.mxu0 0.0
        %1143 = vmatprep.subr.mxu0 0.0
        %1144 = vmatpush1.msra.mxu0 0.0
        %1145 = vmatprep.subr.mxu0 0.0
        %1146 = vmatpush1.msra.mxu0 0.0
        %1147 = vmatprep.subr.mxu0 0.0
        %1148 = vmatpush1.msra.mxu0 0.0
        %1149 = vmatprep.mubr.f32.mxu0 0.0
        %1150 = vmatmul.mubr.f32.gmra.mrb[0].mxu0 %v1083
        %v1151 = vpop.f32.mrb[0].mxu0
        %v1152 = vadd.f32 %v1079, %v1151
        %v1153 = vpop.f32.mrb[0].mxu0
        %1154 = vdwg.mxu0
        %v1155 = vld [vmem:[#allocation3 + $0x2] sm:$0xff]
        %s1156 = scalar_lea.vmem %s5, 160
        %v1157 = vld [vmem:[%s1156] sm:$0xff]
        %v1158 = vld [vmem:[%s1156 + $0x8] sm:$0xff]
        %v1159 = vld [vmem:[%s1156 + $0x10] sm:$0xff]
        %v1160 = vld [vmem:[%s1156 + $0x18] sm:$0xff]
        %v1161 = vld [vmem:[%s1156 + $0x20] sm:$0xff]
        %v1162 = vld [vmem:[%s1156 + $0x28] sm:$0xff]
        %v1163 = vld [vmem:[%s1156 + $0x30] sm:$0xff]
        %v1164 = vld [vmem:[%s1156 + $0x38] sm:$0xff]
        %v1165 = vld [vmem:[%s1156 + $0x40] sm:$0xff]
        %v1166 = vld [vmem:[%s1156 + $0x48] sm:$0xff]
        %v1168 = vsel %vm976, %v1155, 0
        %1170 = vmatprep.subr.mxu0 0.0
        %1171 = vmatpush1.msra.mxu0 %v1157
        %1172 = vmatprep.subr.mxu0 0.0
        %1173 = vmatpush1.msra.mxu0 %v1158
        %1174 = vmatprep.subr.mxu0 0.0
        %1175 = vmatpush1.msra.mxu0 %v1159
        %1176 = vmatprep.subr.mxu0 0.0
        %1177 = vmatpush1.msra.mxu0 %v1160
        %1178 = vmatprep.subr.mxu0 0.0
        %1179 = vmatpush1.msra.mxu0 %v1161
        %1180 = vmatprep.subr.mxu0 0.0
        %1181 = vmatpush1.msra.mxu0 %v1162
        %1182 = vmatprep.subr.mxu0 0.0
        %1183 = vmatpush1.msra.mxu0 %v1163
        %1184 = vmatprep.subr.mxu0 0.0
        %1185 = vmatpush1.msra.mxu0 %v1164
        %1186 = vmatprep.subr.mxu0 0.0
        %1187 = vmatpush1.msra.mxu0 %v1165
        %1188 = vmatprep.subr.mxu0 0.0
        %1189 = vmatpush1.msra.mxu0 %v1166
        %1190 = vmatprep.subr.mxu0 0.0
        %1191 = vmatpush1.msra.mxu0 0.0
        %1192 = vmatprep.subr.mxu0 0.0
        %1193 = vmatpush1.msra.mxu0 0.0
        %1194 = vmatprep.subr.mxu0 0.0
        %1195 = vmatpush1.msra.mxu0 0.0
        %1196 = vmatprep.subr.mxu0 0.0
        %1197 = vmatpush1.msra.mxu0 0.0
        %1198 = vmatprep.subr.mxu0 0.0
        %1199 = vmatpush1.msra.mxu0 0.0
        %1200 = vmatprep.subr.mxu0 0.0
        %1201 = vmatpush1.msra.mxu0 0.0
        %1202 = vmatprep.subr.mxu0 0.0
        %1203 = vmatpush1.msra.mxu0 0.0
        %1204 = vmatprep.subr.mxu0 0.0
        %1205 = vmatpush1.msra.mxu0 0.0
        %1206 = vmatprep.subr.mxu0 0.0
        %1207 = vmatpush1.msra.mxu0 0.0
        %1208 = vmatprep.subr.mxu0 0.0
        %1209 = vmatpush1.msra.mxu0 0.0
        %1210 = vmatprep.subr.mxu0 0.0
        %1211 = vmatpush1.msra.mxu0 0.0
        %1212 = vmatprep.subr.mxu0 0.0
        %1213 = vmatpush1.msra.mxu0 0.0
        %1214 = vmatprep.subr.mxu0 0.0
        %1215 = vmatpush1.msra.mxu0 0.0
        %1216 = vmatprep.subr.mxu0 0.0
        %1217 = vmatpush1.msra.mxu0 0.0
        %1218 = vmatprep.subr.mxu0 0.0
        %1219 = vmatpush1.msra.mxu0 0.0
        %1220 = vmatprep.subr.mxu0 0.0
        %1221 = vmatpush1.msra.mxu0 0.0
        %1222 = vmatprep.subr.mxu0 0.0
        %1223 = vmatpush1.msra.mxu0 0.0
        %1224 = vmatprep.subr.mxu0 0.0
        %1225 = vmatpush1.msra.mxu0 0.0
        %1226 = vmatprep.subr.mxu0 0.0
        %1227 = vmatpush1.msra.mxu0 0.0
        %1228 = vmatprep.subr.mxu0 0.0
        %1229 = vmatpush1.msra.mxu0 0.0
        %1230 = vmatprep.subr.mxu0 0.0
        %1231 = vmatpush1.msra.mxu0 0.0
        %1232 = vmatprep.subr.mxu0 0.0
        %1233 = vmatpush1.msra.mxu0 0.0
        %1234 = vmatprep.mubr.f32.mxu0 0.0
        %1235 = vmatmul.mubr.f32.gmra.mrb[0].mxu0 %v1168
        %v1236 = vpop.f32.mrb[0].mxu0
        %v1237 = vadd.f32 0.0, %v1236
        %v1238 = vpop.f32.mrb[0].mxu0
        %1239 = vdwg.mxu0
        %v1240 = vadd.f32 %v1152, %v1237
        %v1241 = vld [vmem:[%s6] sm:$0x1]
        %v1243 = vlaneseq
        %v1244 = vshrl.u32 %v1243, 7
        %v1245 = vsub.s32 0, %v1244
        %v1246 = vrot.slane %v1241, %v1245
        %v1248 = vadd.f32 %v1240, %v1246
        %v1249 = vmax.f32 %v1248, 0.0
        %1251 = vrot.lane.b32.xlu0 %v1249, 120
        %v1252 = vpop.permute.xlu0 %1251
        %v1254 = vmax.f32 %v1249, %v1252
        %v1256 = vrot.slane %v1254, 1
        %v1258 = vmax.f32 %v1254, %v1256
        %v1259 = vld [vmem:[%s7] sm:$0xf]
        %vm1260 = vcmask 56320
        %v1262 = vsel %vm1260, %v1259, 0
        %v1265 = vsel %vm801, %v1258, 0
        %1267 = vmatprep.subr.mxu0 0.0
        %1268 = vmatpush1.msra.mxu0 %v1265
        %1269 = vmatprep.subr.mxu0 0.0
        %1270 = vmatpush1.msra.mxu0 0.0
        %1271 = vmatprep.subr.mxu0 0.0
        %1272 = vmatpush1.msra.mxu0 0.0
        %1273 = vmatprep.subr.mxu0 0.0
        %1274 = vmatpush1.msra.mxu0 0.0
        %1275 = vmatprep.subr.mxu0 0.0
        %1276 = vmatpush1.msra.mxu0 0.0
        %1277 = vmatprep.subr.mxu0 0.0
        %1278 = vmatpush1.msra.mxu0 0.0
        %1279 = vmatprep.subr.mxu0 0.0
        %1280 = vmatpush1.msra.mxu0 0.0
        %1281 = vmatprep.subr.mxu0 0.0
        %1282 = vmatpush1.msra.mxu0 0.0
        %1283 = vmatprep.subr.mxu0 0.0
        %1284 = vmatpush1.msra.mxu0 0.0
        %1285 = vmatprep.subr.mxu0 0.0
        %1286 = vmatpush1.msra.mxu0 0.0
        %1287 = vmatprep.subr.mxu0 0.0
        %1288 = vmatpush1.msra.mxu0 0.0
        %1289 = vmatprep.subr.mxu0 0.0
        %1290 = vmatpush1.msra.mxu0 0.0
        %1291 = vmatprep.subr.mxu0 0.0
        %1292 = vmatpush1.msra.mxu0 0.0
        %1293 = vmatprep.subr.mxu0 0.0
        %1294 = vmatpush1.msra.mxu0 0.0
        %1295 = vmatprep.subr.mxu0 0.0
        %1296 = vmatpush1.msra.mxu0 0.0
        %1297 = vmatprep.subr.mxu0 0.0
        %1298 = vmatpush1.msra.mxu0 0.0
        %1299 = vmatprep.subr.mxu0 0.0
        %1300 = vmatpush1.msra.mxu0 0.0
        %1301 = vmatprep.subr.mxu0 0.0
        %1302 = vmatpush1.msra.mxu0 0.0
        %1303 = vmatprep.subr.mxu0 0.0
        %1304 = vmatpush1.msra.mxu0 0.0
        %1305 = vmatprep.subr.mxu0 0.0
        %1306 = vmatpush1.msra.mxu0 0.0
        %1307 = vmatprep.subr.mxu0 0.0
        %1308 = vmatpush1.msra.mxu0 0.0
        %1309 = vmatprep.subr.mxu0 0.0
        %1310 = vmatpush1.msra.mxu0 0.0
        %1311 = vmatprep.subr.mxu0 0.0
        %1312 = vmatpush1.msra.mxu0 0.0
        %1313 = vmatprep.subr.mxu0 0.0
        %1314 = vmatpush1.msra.mxu0 0.0
        %1315 = vmatprep.subr.mxu0 0.0
        %1316 = vmatpush1.msra.mxu0 0.0
        %1317 = vmatprep.subr.mxu0 0.0
        %1318 = vmatpush1.msra.mxu0 0.0
        %1319 = vmatprep.subr.mxu0 0.0
        %1320 = vmatpush1.msra.mxu0 0.0
        %1321 = vmatprep.subr.mxu0 0.0
        %1322 = vmatpush1.msra.mxu0 0.0
        %1323 = vmatprep.subr.mxu0 0.0
        %1324 = vmatpush1.msra.mxu0 0.0
        %1325 = vmatprep.subr.mxu0 0.0
        %1326 = vmatpush1.msra.mxu0 0.0
        %1327 = vmatprep.subr.mxu0 0.0
        %1328 = vmatpush1.msra.mxu0 0.0
        %1329 = vmatprep.subr.mxu0 0.0
        %1330 = vmatpush1.msra.mxu0 0.0
        %1331 = vmatprep.mubr.f32.mxu0 0.0
        %1332 = vmatmul.mubr.f32.gmra.mrb[0].mxu0 %v1262
        %v1333 = vpop.f32.mrb[0].mxu0
        %v1334 = vadd.f32 0.0, %v1333
        %v1335 = vpop.f32.mrb[0].mxu0
        %1336 = vdwg.mxu0
        %v1337 = vld [vmem:[%s8] sm:$0xff]
        %v1338 = vld [vmem:[%s8 + $0x8] sm:$0xff]
        %v1339 = vld [vmem:[%s8 + $0x10] sm:$0xff]
        %v1340 = vld [vmem:[%s8 + $0x18] sm:$0xff]
        %v1341 = vld [vmem:[%s8 + $0x20] sm:$0xff]
        %v1342 = vld [vmem:[%s8 + $0x28] sm:$0xff]
        %v1343 = vld [vmem:[%s8 + $0x30] sm:$0xff]
        %vm1344 = vcmask 457728
        %v1346 = vsel %vm1344, %v1334, 0
        %1348 = vmatprep.subr.mxu0 0.0
        %1349 = vmatpush1.msra.mxu0 %v1337
        %1350 = vmatprep.subr.mxu0 0.0
        %1351 = vmatpush1.msra.mxu0 %v1338
        %1352 = vmatprep.subr.mxu0 0.0
        %1353 = vmatpush1.msra.mxu0 %v1339
        %1354 = vmatprep.subr.mxu0 0.0
        %1355 = vmatpush1.msra.mxu0 %v1340
        %1356 = vmatprep.subr.mxu0 0.0
        %1357 = vmatpush1.msra.mxu0 %v1341
        %1358 = vmatprep.subr.mxu0 0.0
        %1359 = vmatpush1.msra.mxu0 %v1342
        %1360 = vmatprep.subr.mxu0 0.0
        %1361 = vmatpush1.msra.mxu0 %v1343
        %1362 = vmatprep.subr.mxu0 0.0
        %1363 = vmatpush1.msra.mxu0 0.0
        %1364 = vmatprep.subr.mxu0 0.0
        %1365 = vmatpush1.msra.mxu0 0.0
        %1366 = vmatprep.subr.mxu0 0.0
        %1367 = vmatpush1.msra.mxu0 0.0
        %1368 = vmatprep.subr.mxu0 0.0
        %1369 = vmatpush1.msra.mxu0 0.0
        %1370 = vmatprep.subr.mxu0 0.0
        %1371 = vmatpush1.msra.mxu0 0.0
        %1372 = vmatprep.subr.mxu0 0.0
        %1373 = vmatpush1.msra.mxu0 0.0
        %1374 = vmatprep.subr.mxu0 0.0
        %1375 = vmatpush1.msra.mxu0 0.0
        %1376 = vmatprep.subr.mxu0 0.0
        %1377 = vmatpush1.msra.mxu0 0.0
        %1378 = vmatprep.subr.mxu0 0.0
        %1379 = vmatpush1.msra.mxu0 0.0
        %1380 = vmatprep.subr.mxu0 0.0
        %1381 = vmatpush1.msra.mxu0 0.0
        %1382 = vmatprep.subr.mxu0 0.0
        %1383 = vmatpush1.msra.mxu0 0.0
        %1384 = vmatprep.subr.mxu0 0.0
        %1385 = vmatpush1.msra.mxu0 0.0
        %1386 = vmatprep.subr.mxu0 0.0
        %1387 = vmatpush1.msra.mxu0 0.0
        %1388 = vmatprep.subr.mxu0 0.0
        %1389 = vmatpush1.msra.mxu0 0.0
        %1390 = vmatprep.subr.mxu0 0.0
        %1391 = vmatpush1.msra.mxu0 0.0
        %1392 = vmatprep.subr.mxu0 0.0
        %1393 = vmatpush1.msra.mxu0 0.0
        %1394 = vmatprep.subr.mxu0 0.0
        %1395 = vmatpush1.msra.mxu0 0.0
        %1396 = vmatprep.subr.mxu0 0.0
        %1397 = vmatpush1.msra.mxu0 0.0
        %1398 = vmatprep.subr.mxu0 0.0
        %1399 = vmatpush1.msra.mxu0 0.0
        %1400 = vmatprep.subr.mxu0 0.0
        %1401 = vmatpush1.msra.mxu0 0.0
        %1402 = vmatprep.subr.mxu0 0.0
        %1403 = vmatpush1.msra.mxu0 0.0
        %1404 = vmatprep.subr.mxu0 0.0
        %1405 = vmatpush1.msra.mxu0 0.0
        %1406 = vmatprep.subr.mxu0 0.0
        %1407 = vmatpush1.msra.mxu0 0.0
        %1408 = vmatprep.subr.mxu0 0.0
        %1409 = vmatpush1.msra.mxu0 0.0
        %1410 = vmatprep.subr.mxu0 0.0
        %1411 = vmatpush1.msra.mxu0 0.0
        %1412 = vmatprep.mubr.f32.mxu0 0.0
        %1413 = vmatmul.mubr.f32.gmra.mrb[0].mxu0 %v1346
        %v1414 = vpop.f32.mrb[0].mxu0
        %v1415 = vadd.f32 0.0, %v1414
        %v1416 = vpop.f32.mrb[0].mxu0
        %1417 = vdwg.mxu0
        %v1418 = vld [vmem:[%s10] sm:$0x1]
        %v1419 = vld [vmem:[%s9] sm:$0xff]
        %v1420 = vld [vmem:[%s9 + $0x8] sm:$0xff]
        %v1421 = vld [vmem:[%s9 + $0x10] sm:$0xff]
        %v1422 = vld [vmem:[%s9 + $0x18] sm:$0xff]
        %vm1423 = vcmask 261120
        %v1425 = vsel %vm1423, %v1415, 0
        %1427 = vmatprep.subr.mxu0 0.0
        %1428 = vmatpush1.msra.mxu0 %v1419
        %1429 = vmatprep.subr.mxu0 0.0
        %1430 = vmatpush1.msra.mxu0 %v1420
        %1431 = vmatprep.subr.mxu0 0.0
        %1432 = vmatpush1.msra.mxu0 %v1421
        %1433 = vmatprep.subr.mxu0 0.0
        %1434 = vmatpush1.msra.mxu0 %v1422
        %1435 = vmatprep.subr.mxu0 0.0
        %1436 = vmatpush1.msra.mxu0 0.0
        %1437 = vmatprep.subr.mxu0 0.0
        %1438 = vmatpush1.msra.mxu0 0.0
        %1439 = vmatprep.subr.mxu0 0.0
        %1440 = vmatpush1.msra.mxu0 0.0
        %1441 = vmatprep.subr.mxu0 0.0
        %1442 = vmatpush1.msra.mxu0 0.0
        %1443 = vmatprep.subr.mxu0 0.0
        %1444 = vmatpush1.msra.mxu0 0.0
        %1445 = vmatprep.subr.mxu0 0.0
        %1446 = vmatpush1.msra.mxu0 0.0
        %1447 = vmatprep.subr.mxu0 0.0
        %1448 = vmatpush1.msra.mxu0 0.0
        %1449 = vmatprep.subr.mxu0 0.0
        %1450 = vmatpush1.msra.mxu0 0.0
        %1451 = vmatprep.subr.mxu0 0.0
        %1452 = vmatpush1.msra.mxu0 0.0
        %1453 = vmatprep.subr.mxu0 0.0
        %1454 = vmatpush1.msra.mxu0 0.0
        %1455 = vmatprep.subr.mxu0 0.0
        %1456 = vmatpush1.msra.mxu0 0.0
        %1457 = vmatprep.subr.mxu0 0.0
        %1458 = vmatpush1.msra.mxu0 0.0
        %1459 = vmatprep.subr.mxu0 0.0
        %1460 = vmatpush1.msra.mxu0 0.0
        %1461 = vmatprep.subr.mxu0 0.0
        %1462 = vmatpush1.msra.mxu0 0.0
        %1463 = vmatprep.subr.mxu0 0.0
        %1464 = vmatpush1.msra.mxu0 0.0
        %1465 = vmatprep.subr.mxu0 0.0
        %1466 = vmatpush1.msra.mxu0 0.0
        %1467 = vmatprep.subr.mxu0 0.0
        %1468 = vmatpush1.msra.mxu0 0.0
        %1469 = vmatprep.subr.mxu0 0.0
        %1470 = vmatpush1.msra.mxu0 0.0
        %1471 = vmatprep.subr.mxu0 0.0
        %1472 = vmatpush1.msra.mxu0 0.0
        %1473 = vmatprep.subr.mxu0 0.0
        %1474 = vmatpush1.msra.mxu0 0.0
        %1475 = vmatprep.subr.mxu0 0.0
        %1476 = vmatpush1.msra.mxu0 0.0
        %1477 = vmatprep.subr.mxu0 0.0
        %1478 = vmatpush1.msra.mxu0 0.0
        %1479 = vmatprep.subr.mxu0 0.0
        %1480 = vmatpush1.msra.mxu0 0.0
        %1481 = vmatprep.subr.mxu0 0.0
        %1482 = vmatpush1.msra.mxu0 0.0
        %1483 = vmatprep.subr.mxu0 0.0
        %1484 = vmatpush1.msra.mxu0 0.0
        %1485 = vmatprep.subr.mxu0 0.0
        %1486 = vmatpush1.msra.mxu0 0.0
        %1487 = vmatprep.subr.mxu0 0.0
        %1488 = vmatpush1.msra.mxu0 0.0
        %1489 = vmatprep.subr.mxu0 0.0
        %1490 = vmatpush1.msra.mxu0 0.0
        %1491 = vmatprep.mubr.f32.mxu0 0.0
        %1492 = vmatmul.mubr.f32.gmra.mrb[0].mxu0 %v1425
        %v1493 = vpop.f32.mrb[0].mxu0
        %v1494 = vadd.f32 0.0, %v1493
        %v1495 = vpop.f32.mrb[0].mxu0
        %1496 = vdwg.mxu0
        %v1497 = vadd.f32 %v1418, %v1494
        %v1498 = vld [vmem:[%s9 + $0x20] sm:$0xff]
        %v1499 = vld [vmem:[%s9 + $0x28] sm:$0xff]
        %v1500 = vld [vmem:[%s9 + $0x30] sm:$0xff]
        %v1501 = vld [vmem:[%s9 + $0x38] sm:$0xff]
        %v1502 = vrot.slane %v1415, 1
        %v1503 = vsel %vm1423, %v1502, 0
        %1505 = vmatprep.subr.mxu0 0.0
        %1506 = vmatpush1.msra.mxu0 %v1498
        %1507 = vmatprep.subr.mxu0 0.0
        %1508 = vmatpush1.msra.mxu0 %v1499
        %1509 = vmatprep.subr.mxu0 0.0
        %1510 = vmatpush1.msra.mxu0 %v1500
        %1511 = vmatprep.subr.mxu0 0.0
        %1512 = vmatpush1.msra.mxu0 %v1501
        %1513 = vmatprep.subr.mxu0 0.0
        %1514 = vmatpush1.msra.mxu0 0.0
        %1515 = vmatprep.subr.mxu0 0.0
        %1516 = vmatpush1.msra.mxu0 0.0
        %1517 = vmatprep.subr.mxu0 0.0
        %1518 = vmatpush1.msra.mxu0 0.0
        %1519 = vmatprep.subr.mxu0 0.0
        %1520 = vmatpush1.msra.mxu0 0.0
        %1521 = vmatprep.subr.mxu0 0.0
        %1522 = vmatpush1.msra.mxu0 0.0
        %1523 = vmatprep.subr.mxu0 0.0
        %1524 = vmatpush1.msra.mxu0 0.0
        %1525 = vmatprep.subr.mxu0 0.0
        %1526 = vmatpush1.msra.mxu0 0.0
        %1527 = vmatprep.subr.mxu0 0.0
        %1528 = vmatpush1.msra.mxu0 0.0
        %1529 = vmatprep.subr.mxu0 0.0
        %1530 = vmatpush1.msra.mxu0 0.0
        %1531 = vmatprep.subr.mxu0 0.0
        %1532 = vmatpush1.msra.mxu0 0.0
        %1533 = vmatprep.subr.mxu0 0.0
        %1534 = vmatpush1.msra.mxu0 0.0
        %1535 = vmatprep.subr.mxu0 0.0
        %1536 = vmatpush1.msra.mxu0 0.0
        %1537 = vmatprep.subr.mxu0 0.0
        %1538 = vmatpush1.msra.mxu0 0.0
        %1539 = vmatprep.subr.mxu0 0.0
        %1540 = vmatpush1.msra.mxu0 0.0
        %1541 = vmatprep.subr.mxu0 0.0
        %1542 = vmatpush1.msra.mxu0 0.0
        %1543 = vmatprep.subr.mxu0 0.0
        %1544 = vmatpush1.msra.mxu0 0.0
        %1545 = vmatprep.subr.mxu0 0.0
        %1546 = vmatpush1.msra.mxu0 0.0
        %1547 = vmatprep.subr.mxu0 0.0
        %1548 = vmatpush1.msra.mxu0 0.0
        %1549 = vmatprep.subr.mxu0 0.0
        %1550 = vmatpush1.msra.mxu0 0.0
        %1551 = vmatprep.subr.mxu0 0.0
        %1552 = vmatpush1.msra.mxu0 0.0
        %1553 = vmatprep.subr.mxu0 0.0
        %1554 = vmatpush1.msra.mxu0 0.0
        %1555 = vmatprep.subr.mxu0 0.0
        %1556 = vmatpush1.msra.mxu0 0.0
        %1557 = vmatprep.subr.mxu0 0.0
        %1558 = vmatpush1.msra.mxu0 0.0
        %1559 = vmatprep.subr.mxu0 0.0
        %1560 = vmatpush1.msra.mxu0 0.0
        %1561 = vmatprep.subr.mxu0 0.0
        %1562 = vmatpush1.msra.mxu0 0.0
        %1563 = vmatprep.subr.mxu0 0.0
        %1564 = vmatpush1.msra.mxu0 0.0
        %1565 = vmatprep.subr.mxu0 0.0
        %1566 = vmatpush1.msra.mxu0 0.0
        %1567 = vmatprep.subr.mxu0 0.0
        %1568 = vmatpush1.msra.mxu0 0.0
        %1569 = vmatprep.mubr.f32.mxu0 0.0
        %1570 = vmatmul.mubr.f32.gmra.mrb[0].mxu0 %v1503
        %v1571 = vpop.f32.mrb[0].mxu0
        %v1572 = vadd.f32 0.0, %v1571
        %v1573 = vpop.f32.mrb[0].mxu0
        %1574 = vdwg.mxu0
        %v1575 = vadd.f32 %v1497, %v1572
        %v1576 = vld [vmem:[%s9 + $0x40] sm:$0xff]
        %v1577 = vld [vmem:[%s9 + $0x48] sm:$0xff]
        %v1578 = vld [vmem:[%s9 + $0x50] sm:$0xff]
        %v1579 = vld [vmem:[%s9 + $0x58] sm:$0xff]
        %v1580 = vrot.slane %v1415, 2
        %v1581 = vsel %vm1423, %v1580, 0
        %1583 = vmatprep.subr.mxu0 0.0
        %1584 = vmatpush1.msra.mxu0 %v1576
        %1585 = vmatprep.subr.mxu0 0.0
        %1586 = vmatpush1.msra.mxu0 %v1577
        %1587 = vmatprep.subr.mxu0 0.0
        %1588 = vmatpush1.msra.mxu0 %v1578
        %1589 = vmatprep.subr.mxu0 0.0
        %1590 = vmatpush1.msra.mxu0 %v1579
        %1591 = vmatprep.subr.mxu0 0.0
        %1592 = vmatpush1.msra.mxu0 0.0
        %1593 = vmatprep.subr.mxu0 0.0
        %1594 = vmatpush1.msra.mxu0 0.0
        %1595 = vmatprep.subr.mxu0 0.0
        %1596 = vmatpush1.msra.mxu0 0.0
        %1597 = vmatprep.subr.mxu0 0.0
        %1598 = vmatpush1.msra.mxu0 0.0
        %1599 = vmatprep.subr.mxu0 0.0
        %1600 = vmatpush1.msra.mxu0 0.0
        %1601 = vmatprep.subr.mxu0 0.0
        %1602 = vmatpush1.msra.mxu0 0.0
        %1603 = vmatprep.subr.mxu0 0.0
        %1604 = vmatpush1.msra.mxu0 0.0
        %1605 = vmatprep.subr.mxu0 0.0
        %1606 = vmatpush1.msra.mxu0 0.0
        %1607 = vmatprep.subr.mxu0 0.0
        %1608 = vmatpush1.msra.mxu0 0.0
        %1609 = vmatprep.subr.mxu0 0.0
        %1610 = vmatpush1.msra.mxu0 0.0
        %1611 = vmatprep.subr.mxu0 0.0
        %1612 = vmatpush1.msra.mxu0 0.0
        %1613 = vmatprep.subr.mxu0 0.0
        %1614 = vmatpush1.msra.mxu0 0.0
        %1615 = vmatprep.subr.mxu0 0.0
        %1616 = vmatpush1.msra.mxu0 0.0
        %1617 = vmatprep.subr.mxu0 0.0
        %1618 = vmatpush1.msra.mxu0 0.0
        %1619 = vmatprep.subr.mxu0 0.0
        %1620 = vmatpush1.msra.mxu0 0.0
        %1621 = vmatprep.subr.mxu0 0.0
        %1622 = vmatpush1.msra.mxu0 0.0
        %1623 = vmatprep.subr.mxu0 0.0
        %1624 = vmatpush1.msra.mxu0 0.0
        %1625 = vmatprep.subr.mxu0 0.0
        %1626 = vmatpush1.msra.mxu0 0.0
        %1627 = vmatprep.subr.mxu0 0.0
        %1628 = vmatpush1.msra.mxu0 0.0
        %1629 = vmatprep.subr.mxu0 0.0
        %1630 = vmatpush1.msra.mxu0 0.0
        %1631 = vmatprep.subr.mxu0 0.0
        %1632 = vmatpush1.msra.mxu0 0.0
        %1633 = vmatprep.subr.mxu0 0.0
        %1634 = vmatpush1.msra.mxu0 0.0
        %1635 = vmatprep.subr.mxu0 0.0
        %1636 = vmatpush1.msra.mxu0 0.0
        %1637 = vmatprep.subr.mxu0 0.0
        %1638 = vmatpush1.msra.mxu0 0.0
        %1639 = vmatprep.subr.mxu0 0.0
        %1640 = vmatpush1.msra.mxu0 0.0
        %1641 = vmatprep.subr.mxu0 0.0
        %1642 = vmatpush1.msra.mxu0 0.0
        %1643 = vmatprep.subr.mxu0 0.0
        %1644 = vmatpush1.msra.mxu0 0.0
        %1645 = vmatprep.subr.mxu0 0.0
        %1646 = vmatpush1.msra.mxu0 0.0
        %1647 = vmatprep.mubr.f32.mxu0 0.0
        %1648 = vmatmul.mubr.f32.gmra.mrb[0].mxu0 %v1581
        %v1649 = vpop.f32.mrb[0].mxu0
        %v1650 = vadd.f32 0.0, %v1649
        %v1651 = vpop.f32.mrb[0].mxu0
        %1652 = vdwg.mxu0
        %v1653 = vadd.f32 %v1575, %v1650
        %v1654 = vld [vmem:[%s9 + $0x60] sm:$0xff]
        %v1655 = vld [vmem:[%s9 + $0x68] sm:$0xff]
        %v1656 = vld [vmem:[%s9 + $0x70] sm:$0xff]
        %v1657 = vld [vmem:[%s9 + $0x78] sm:$0xff]
        %v1658 = vrot.slane %v1415, 3
        %v1659 = vsel %vm1423, %v1658, 0
        %1661 = vmatprep.subr.mxu0 0.0
        %1662 = vmatpush1.msra.mxu0 %v1654
        %1663 = vmatprep.subr.mxu0 0.0
        %1664 = vmatpush1.msra.mxu0 %v1655
        %1665 = vmatprep.subr.mxu0 0.0
        %1666 = vmatpush1.msra.mxu0 %v1656
        %1667 = vmatprep.subr.mxu0 0.0
        %1668 = vmatpush1.msra.mxu0 %v1657
        %1669 = vmatprep.subr.mxu0 0.0
        %1670 = vmatpush1.msra.mxu0 0.0
        %1671 = vmatprep.subr.mxu0 0.0
        %1672 = vmatpush1.msra.mxu0 0.0
        %1673 = vmatprep.subr.mxu0 0.0
        %1674 = vmatpush1.msra.mxu0 0.0
        %1675 = vmatprep.subr.mxu0 0.0
        %1676 = vmatpush1.msra.mxu0 0.0
        %1677 = vmatprep.subr.mxu0 0.0
        %1678 = vmatpush1.msra.mxu0 0.0
        %1679 = vmatprep.subr.mxu0 0.0
        %1680 = vmatpush1.msra.mxu0 0.0
        %1681 = vmatprep.subr.mxu0 0.0
        %1682 = vmatpush1.msra.mxu0 0.0
        %1683 = vmatprep.subr.mxu0 0.0
        %1684 = vmatpush1.msra.mxu0 0.0
        %1685 = vmatprep.subr.mxu0 0.0
        %1686 = vmatpush1.msra.mxu0 0.0
        %1687 = vmatprep.subr.mxu0 0.0
        %1688 = vmatpush1.msra.mxu0 0.0
        %1689 = vmatprep.subr.mxu0 0.0
        %1690 = vmatpush1.msra.mxu0 0.0
        %1691 = vmatprep.subr.mxu0 0.0
        %1692 = vmatpush1.msra.mxu0 0.0
        %1693 = vmatprep.subr.mxu0 0.0
        %1694 = vmatpush1.msra.mxu0 0.0
        %1695 = vmatprep.subr.mxu0 0.0
        %1696 = vmatpush1.msra.mxu0 0.0
        %1697 = vmatprep.subr.mxu0 0.0
        %1698 = vmatpush1.msra.mxu0 0.0
        %1699 = vmatprep.subr.mxu0 0.0
        %1700 = vmatpush1.msra.mxu0 0.0
        %1701 = vmatprep.subr.mxu0 0.0
        %1702 = vmatpush1.msra.mxu0 0.0
        %1703 = vmatprep.subr.mxu0 0.0
        %1704 = vmatpush1.msra.mxu0 0.0
        %1705 = vmatprep.subr.mxu0 0.0
        %1706 = vmatpush1.msra.mxu0 0.0
        %1707 = vmatprep.subr.mxu0 0.0
        %1708 = vmatpush1.msra.mxu0 0.0
        %1709 = vmatprep.subr.mxu0 0.0
        %1710 = vmatpush1.msra.mxu0 0.0
        %1711 = vmatprep.subr.mxu0 0.0
        %1712 = vmatpush1.msra.mxu0 0.0
        %1713 = vmatprep.subr.mxu0 0.0
        %1714 = vmatpush1.msra.mxu0 0.0
        %1715 = vmatprep.subr.mxu0 0.0
        %1716 = vmatpush1.msra.mxu0 0.0
        %1717 = vmatprep.subr.mxu0 0.0
        %1718 = vmatpush1.msra.mxu0 0.0
        %1719 = vmatprep.subr.mxu0 0.0
        %1720 = vmatpush1.msra.mxu0 0.0
        %1721 = vmatprep.subr.mxu0 0.0
        %1722 = vmatpush1.msra.mxu0 0.0
        %1723 = vmatprep.subr.mxu0 0.0
        %1724 = vmatpush1.msra.mxu0 0.0
        %1725 = vmatprep.mubr.f32.mxu0 0.0
        %1726 = vmatmul.mubr.f32.gmra.mrb[0].mxu0 %v1659
        %v1727 = vpop.f32.mrb[0].mxu0
        %v1728 = vadd.f32 0.0, %v1727
        %v1729 = vpop.f32.mrb[0].mxu0
        %1730 = vdwg.mxu0
        %v1731 = vadd.f32 %v1653, %v1728
        %v1732 = vmax.f32 %v1731, 0.0
        %v1733 = vld [vmem:[%s11] sm:$0xff]
        %v1734 = vld [vmem:[%s11 + $0x8] sm:$0xff]
        %v1735 = vld [vmem:[%s11 + $0x10] sm:$0xff]
        %v1736 = vld [vmem:[%s11 + $0x18] sm:$0xff]
        %v1737 = vld [vmem:[%s12] sm:$0x1]
        %v1739 = vsel %vm1423, %v1732, 0
        %1741 = vmatprep.subr.mxu0 0.0
        %1742 = vmatpush1.msra.mxu0 %v1733
        %1743 = vmatprep.subr.mxu0 0.0
        %1744 = vmatpush1.msra.mxu0 %v1734
        %1745 = vmatprep.subr.mxu0 0.0
        %1746 = vmatpush1.msra.mxu0 %v1735
        %1747 = vmatprep.subr.mxu0 0.0
        %1748 = vmatpush1.msra.mxu0 %v1736
        %1749 = vmatprep.subr.mxu0 0.0
        %1750 = vmatpush1.msra.mxu0 0.0
        %1751 = vmatprep.subr.mxu0 0.0
        %1752 = vmatpush1.msra.mxu0 0.0
        %1753 = vmatprep.subr.mxu0 0.0
        %1754 = vmatpush1.msra.mxu0 0.0
        %1755 = vmatprep.subr.mxu0 0.0
        %1756 = vmatpush1.msra.mxu0 0.0
        %1757 = vmatprep.subr.mxu0 0.0
        %1758 = vmatpush1.msra.mxu0 0.0
        %1759 = vmatprep.subr.mxu0 0.0
        %1760 = vmatpush1.msra.mxu0 0.0
        %1761 = vmatprep.subr.mxu0 0.0
        %1762 = vmatpush1.msra.mxu0 0.0
        %1763 = vmatprep.subr.mxu0 0.0
        %1764 = vmatpush1.msra.mxu0 0.0
        %1765 = vmatprep.subr.mxu0 0.0
        %1766 = vmatpush1.msra.mxu0 0.0
        %1767 = vmatprep.subr.mxu0 0.0
        %1768 = vmatpush1.msra.mxu0 0.0
        %1769 = vmatprep.subr.mxu0 0.0
        %1770 = vmatpush1.msra.mxu0 0.0
        %1771 = vmatprep.subr.mxu0 0.0
        %1772 = vmatpush1.msra.mxu0 0.0
        %1773 = vmatprep.subr.mxu0 0.0
        %1774 = vmatpush1.msra.mxu0 0.0
        %1775 = vmatprep.subr.mxu0 0.0
        %1776 = vmatpush1.msra.mxu0 0.0
        %1777 = vmatprep.subr.mxu0 0.0
        %1778 = vmatpush1.msra.mxu0 0.0
        %1779 = vmatprep.subr.mxu0 0.0
        %1780 = vmatpush1.msra.mxu0 0.0
        %1781 = vmatprep.subr.mxu0 0.0
        %1782 = vmatpush1.msra.mxu0 0.0
        %1783 = vmatprep.subr.mxu0 0.0
        %1784 = vmatpush1.msra.mxu0 0.0
        %1785 = vmatprep.subr.mxu0 0.0
        %1786 = vmatpush1.msra.mxu0 0.0
        %1787 = vmatprep.subr.mxu0 0.0
        %1788 = vmatpush1.msra.mxu0 0.0
        %1789 = vmatprep.subr.mxu0 0.0
        %1790 = vmatpush1.msra.mxu0 0.0
        %1791 = vmatprep.subr.mxu0 0.0
        %1792 = vmatpush1.msra.mxu0 0.0
        %1793 = vmatprep.subr.mxu0 0.0
        %1794 = vmatpush1.msra.mxu0 0.0
        %1795 = vmatprep.subr.mxu0 0.0
        %1796 = vmatpush1.msra.mxu0 0.0
        %1797 = vmatprep.subr.mxu0 0.0
        %1798 = vmatpush1.msra.mxu0 0.0
        %1799 = vmatprep.subr.mxu0 0.0
        %1800 = vmatpush1.msra.mxu0 0.0
        %1801 = vmatprep.subr.mxu0 0.0
        %1802 = vmatpush1.msra.mxu0 0.0
        %1803 = vmatprep.subr.mxu0 0.0
        %1804 = vmatpush1.msra.mxu0 0.0
        %1805 = vmatprep.mubr.f32.mxu0 0.0
        %1806 = vmatmul.mubr.f32.gmra.mrb[0].mxu0 %v1739
        %v1807 = vpop.f32.mrb[0].mxu0
        %v1808 = vadd.f32 %v1737, %v1807
        %v1809 = vpop.f32.mrb[0].mxu0
        %1810 = vdwg.mxu0
        %vm1811 = vcmask 73728
        %1812 = vst.msk [vmem:[%s432] sm:$0x1] %vm1811, %v1808
        %s1813 = sand.u32 %s313, 1
        %s1814 = scalar_lea.sflag [#allocation5], %s1813
        %s1815 = sand.u32 %s313, 1
        %s1816 = scalar_lea.vmem [#allocation4], %s1815
        // Predicated region
        $region73: #{small_cnn_forward.1} parent=71 // pred_check
          %p1817 = pneg %p323
        $region74: #{small_cnn_forward.1} parent=71 // pred_check_branch
          %1819 = sbr.rel (%p1817) target = $region76
        $region75: #{small_cnn_forward.1} parent=71 // pred_region
          %s1821 = ssub.s32 16, 16
          %1822 = vsyncadd %s1814, %s1821
          %s1823 = smul.addr %s27, 16
          %s1824 = scalar_lea.hbm %s13, %s1823
          %s1826 = sshll.u32 %s1816, 4
          %s1827 = int_to_ptr.vmem [resolvable:$true] %s1826
          %1829 = dma.vmem_to_hbm [thread:$0]  %s1827, 16, %s1824, %s1814
        $region76: #{small_cnn_forward.1} parent=71 // pred_fallthru
          _
      $region72: #{small_cnn_forward.1} parent=5 // pred_fallthru
        _
      %p1830 = scmp.le.s32.totalorder 2, %s22
      // Predicated region
      $region77: #{small_cnn_forward.1} parent=5 // pred_check
        %p1831 = pneg %p1830
      $region78: #{small_cnn_forward.1} parent=5 // pred_check_branch
        %1833 = sbr.rel (%p1831) target = $region80
      $region79: #{small_cnn_forward.1} parent=5 // pred_region
        %s1834 = ssub.s32 %s22, 2
        // Predicated region
        $region81: #{small_cnn_forward.1} parent=79 // pred_check
          %p1835 = pneg %p329
        $region82: #{small_cnn_forward.1} parent=79 // pred_check_branch
          %1837 = sbr.rel (%p1835) target = $region84
        $region83: #{small_cnn_forward.1} parent=79 // pred_region
          %s1838 = sand.u32 %s314, 1
          %s1839 = scalar_lea.sflag [#allocation5], %s1838
          %s1840 = sand.u32 %s314, 1
          %s1841 = scalar_lea.vmem [#allocation4], %s1840
          %1842 = dma.done %s1839, 16
        $region84: #{small_cnn_forward.1} parent=79 // pred_fallthru
          _
      $region80: #{small_cnn_forward.1} parent=5 // pred_fallthru
        _
    $region6: #{small_cnn_forward.1} parent=1 // loop_footer
      %s26 = sadd.s32 1, %s22
    $region7: #{small_cnn_forward.1} parent=1 // loop_footer_branch
      %21 = sbr.rel target = $region3
    $region8: #{small_cnn_forward.1} parent=1 // loop_exit
      _
    %1843 = vsyncpa [#allocation5], 1
    %s1844 = scalar_lea.sflag [#allocation5], 1
    %1845 = vsyncpa %s1844, 1

</llo_original>
